<compile_context>
chip_gen: v5e
topology: v5e:2x2
jax: 0.10.0
libtpu: 0.0.40
codegen_flags: <defaults>
</compile_context>

<pallas_src>
import jax
import jax.numpy as jnp
from jax.experimental import pallas as pl
from jax.experimental.pallas import tpu as pltpu

NEG_SLOPE = 0.1
EPS = 1e-5


def _leaky(x):
    return jnp.where(x >= 0, x, NEG_SLOPE * x)


def resblock_kernel(x_ref, w1_ref, s1_ref, b1_ref, w2_ref, s2_ref, b2_ref, o_ref):
    # x_ref block: (1, H, W, C) bf16, NHWC (C on lanes).
    x = x_ref[0]                                    # (H, W, C) bf16
    H, W, C = x.shape
    Ch = w1_ref.shape[1]
    HW = H * W

    x2 = x.reshape(HW, C)                           # (HW, C) bf16

    # ---- conv1 (1x1) + folded BN1 + LeakyReLU (f32 accumulate) ----
    h = jnp.dot(x2, w1_ref[...], preferred_element_type=jnp.float32)   # (HW, Ch)
    h = h * s1_ref[...] + b1_ref[...]
    h = _leaky(h)                                   # (HW, Ch) f32

    # ---- build the 9 conv2 taps with rolls + edge masks (no zero-pad copies) ----
    # Column index of every flattened position (built via 3-D iota, then a free
    # reshape since the mask is data like any other).
    col = jax.lax.broadcasted_iota(jnp.int32, (H, W, Ch), 1).reshape(HW, Ch)
    zero_h = jnp.zeros_like(h)
    # h[i, j-1] and h[i, j+1]: sublane roll by +/-1 in flattened form; the wrap
    # across row boundaries lands exactly on the masked border columns.
    h_l = jnp.where(col == 0, zero_h, pltpu.roll(h, shift=1, axis=0))
    h_r = jnp.where(col == W - 1, zero_h, pltpu.roll(h, shift=HW - 1, axis=0))
    hc = jnp.concatenate([h_l, h, h_r], axis=-1)    # (HW, 3*Ch), dj = 0,1,2

    # h[i-1, :] and h[i+1, :]: sublane roll by +/-W, mask first/last image row.
    row = jax.lax.broadcasted_iota(jnp.int32, (HW, 3 * Ch), 0)
    zero_hc = jnp.zeros_like(hc)
    hc_u = jnp.where(row < W, zero_hc, pltpu.roll(hc, shift=W, axis=0))
    hc_d = jnp.where(row >= HW - W, zero_hc, pltpu.roll(hc, shift=HW - W, axis=0))

    # LHS for the fused conv2 matmul: columns ordered (di, dj, cin), matching
    # the host-side (3, 3, Ch, C) -> (9*Ch, C) weight reshape.
    taps = jnp.concatenate([hc_u, hc, hc_d], axis=-1).astype(jnp.bfloat16)  # (HW, 9*Ch)

    # ---- conv2 (3x3) as ONE matmul + folded BN2 + LeakyReLU + residual ----
    acc = jnp.dot(taps, w2_ref[...], preferred_element_type=jnp.float32)    # (HW, C)
    acc = acc * s2_ref[...] + b2_ref[...]
    out = _leaky(acc) + x2.astype(jnp.float32)

    o_ref[0] = out.reshape(H, W, C)


def _vmem_limit_bytes():
    try:
        cap = int(pltpu.get_tpu_info().vmem_capacity_bytes)
    except Exception:
        return None
    # Leave headroom; caps at 48 MiB on v7x (64 MiB) and 96 MiB on v5e/v6e.
    return int(min(96 * 1024 * 1024, (cap * 3) // 4))


def resblock_forward(x_nchw, params):
    """x_nchw: (N, C, H, W) float32, like the PyTorch module input."""
    N, C, H, W = x_nchw.shape
    Ch = C // 2
    w1, s1, b1, w2f, s2, b2 = params           # w1 (C,Ch) bf16, w2f (9*Ch,C) bf16
    x = jnp.transpose(x_nchw, (0, 2, 3, 1)).astype(jnp.bfloat16)   # NHWC, bf16 DMA

    flops = 2 * N * H * W * Ch * C * 10        # conv1 + conv2 MACs * 2
    bytes_accessed = (N * H * W * C * 2        # x in (bf16)
                      + N * H * W * C * 4      # out (f32)
                      + (C * Ch + 9 * Ch * C) * 2            # weights (bf16)
                      + (2 * Ch + 2 * C) * 4)                # scales/biases (f32)

    out = pl.pallas_call(
        resblock_kernel,
        out_shape=jax.ShapeDtypeStruct((N, H, W, C), jnp.float32),
        grid=(N,),
        in_specs=[
            pl.BlockSpec((1, H, W, C), lambda n: (n, 0, 0, 0)),
            pl.BlockSpec((C, Ch), lambda n: (0, 0)),
            pl.BlockSpec((1, Ch), lambda n: (0, 0)),
            pl.BlockSpec((1, Ch), lambda n: (0, 0)),
            pl.BlockSpec((9 * Ch, C), lambda n: (0, 0)),
            pl.BlockSpec((1, C), lambda n: (0, 0)),
            pl.BlockSpec((1, C), lambda n: (0, 0)),
        ],
        out_specs=pl.BlockSpec((1, H, W, C), lambda n: (n, 0, 0, 0)),
        compiler_params=pltpu.CompilerParams(
            dimension_semantics=("parallel",),
            vmem_limit_bytes=_vmem_limit_bytes()),
        cost_estimate=pl.CostEstimate(
            flops=int(flops), transcendentals=0,
            bytes_accessed=int(bytes_accessed)),
    )(x, w1, s1, b1, w2f, s2, b2)

    return jnp.transpose(out, (0, 3, 1, 2))    # back to NCHW


def ref_forward(x_nchw, params):
    """Pure-JAX f32 reference (XLA convs) for verification."""
    w1, s1, b1, w2, s2, b2 = params            # w2 in HWIO (3,3,Ch,C), all f32
    x = jnp.transpose(x_nchw, (0, 2, 3, 1))
    h = jnp.einsum('nhwc,cd->nhwd', x, w1)
    h = h * s1.reshape(1, 1, 1, -1) + b1.reshape(1, 1, 1, -1)
    h = jnp.where(h >= 0, h, NEG_SLOPE * h)
    y = jax.lax.conv_general_dilated(
        h, w2, window_strides=(1, 1), padding='SAME',
        dimension_numbers=('NHWC', 'HWIO', 'NHWC'))
    y = y * s2.reshape(1, 1, 1, -1) + b2.reshape(1, 1, 1, -1)
    y = jnp.where(y >= 0, y, NEG_SLOPE * y)
    return jnp.transpose(y + x, (0, 3, 1, 2))


def fold_bn(gamma, beta, mean, var):
    s = gamma / jnp.sqrt(var + EPS)
    return s, beta - mean * s


if __name__ == "__main__":
    N, C, H, W = 2, 8, 16, 16          # in_channels must be even
    Ch = C // 2

    keys = jax.random.split(jax.random.PRNGKey(0), 12)
    x = jax.random.normal(keys[0], (N, C, H, W), jnp.float32)

    # conv1 weight: torch (Ch, C, 1, 1) -> stored as (C, Ch)
    w1 = 0.1 * jax.random.normal(keys[1], (C, Ch), jnp.float32)
    g1 = 1.0 + 0.1 * jax.random.normal(keys[2], (Ch,), jnp.float32)
    be1 = 0.1 * jax.random.normal(keys[3], (Ch,), jnp.float32)
    m1 = 0.1 * jax.random.normal(keys[4], (Ch,), jnp.float32)
    v1 = jnp.abs(jax.random.normal(keys[5], (Ch,), jnp.float32)) + 0.5

    # conv2 weight: torch (C, Ch, 3, 3) -> stored HWIO (3, 3, Ch, C)
    w2 = 0.1 * jax.random.normal(keys[6], (3, 3, Ch, C), jnp.float32)
    g2 = 1.0 + 0.1 * jax.random.normal(keys[7], (C,), jnp.float32)
    be2 = 0.1 * jax.random.normal(keys[8], (C,), jnp.float32)
    m2 = 0.1 * jax.random.normal(keys[9], (C,), jnp.float32)
    v2 = jnp.abs(jax.random.normal(keys[10], (C,), jnp.float32)) + 0.5

    s1, b1 = fold_bn(g1, be1, m1, v1)
    s2, b2 = fold_bn(g2, be2, m2, v2)

    # Kernel params: bf16 matmul weights, f32 folded-BN scale/bias, conv2
    # weight pre-flattened to (9*Ch, C) with (di, dj, cin) row order.
    kernel_params = (w1.astype(jnp.bfloat16),
                     s1.reshape(1, Ch), b1.reshape(1, Ch),
                     w2.reshape(9 * Ch, C).astype(jnp.bfloat16),
                     s2.reshape(1, C), b2.reshape(1, C))
    ref_params = (w1, s1, b1, w2, s2, b2)

    fwd = jax.jit(resblock_forward)
    out = fwd(x, kernel_params)
    out = jax.block_until_ready(out)

    ref = ref_forward(x, ref_params)
    assert out.shape == (N, C, H, W)
    # bf16 matmul operands / bf16 x => compare against the f32 reference with a
    # loosened tolerance.
    assert jnp.allclose(out, ref, atol=3e-2, rtol=3e-2), \
        f"max abs err {jnp.max(jnp.abs(out - ref))}"
    print("KERNEL_OK")
</pallas_src>

<mosaic_0001>
module attributes {stable_mosaic.version = 11 : i64} {
  func.func @resblock_kernel(%arg0: i32, %arg1: memref<1x16x16x8xbf16, #tpu.memory_space<vmem>>, %arg2: memref<8x4xbf16, #tpu.memory_space<vmem>>, %arg3: memref<1x4xf32, #tpu.memory_space<vmem>>, %arg4: memref<1x4xf32, #tpu.memory_space<vmem>>, %arg5: memref<36x8xbf16, #tpu.memory_space<vmem>>, %arg6: memref<1x8xf32, #tpu.memory_space<vmem>>, %arg7: memref<1x8xf32, #tpu.memory_space<vmem>>, %arg8: memref<1x16x16x8xf32, #tpu.memory_space<vmem>>) attributes {dimension_semantics = [#tpu.dimension_semantics<parallel>], iteration_bounds = array<i64: 2>, scalar_prefetch = 0 : i64, scratch_operands = 0 : i64, tpu.core_type = #tpu.core_type<tc>, window_params = [{transform_indices = @transform_0, window_bounds = array<i64: 1, 16, 16, 8>}, {pipeline_mode = #tpu.pipeline_mode<synchronous>, transform_indices = @transform_1, window_bounds = array<i64: 8, 4>}, {pipeline_mode = #tpu.pipeline_mode<synchronous>, transform_indices = @transform_2, window_bounds = array<i64: 1, 4>}, {pipeline_mode = #tpu.pipeline_mode<synchronous>, transform_indices = @transform_3, window_bounds = array<i64: 1, 4>}, {pipeline_mode = #tpu.pipeline_mode<synchronous>, transform_indices = @transform_4, window_bounds = array<i64: 36, 8>}, {pipeline_mode = #tpu.pipeline_mode<synchronous>, transform_indices = @transform_5, window_bounds = array<i64: 1, 8>}, {pipeline_mode = #tpu.pipeline_mode<synchronous>, transform_indices = @transform_6, window_bounds = array<i64: 1, 8>}, {transform_indices = @transform_7, window_bounds = array<i64: 1, 16, 16, 8>}]} {
    %c0 = arith.constant 0 : index
    %c0_0 = arith.constant 0 : index
    %c0_1 = arith.constant 0 : index
    %c0_2 = arith.constant 0 : index
    %0 = vector.load %arg1[%c0, %c0_0, %c0_1, %c0_2] : memref<1x16x16x8xbf16, #tpu.memory_space<vmem>>, vector<1x16x16x8xbf16>
    %1 = vector.shape_cast %0 : vector<1x16x16x8xbf16> to vector<16x16x8xbf16>
    %2 = vector.shape_cast %1 : vector<16x16x8xbf16> to vector<256x8xbf16>
    %c0_3 = arith.constant 0 : index
    %c0_4 = arith.constant 0 : index
    %3 = vector.load %arg2[%c0_3, %c0_4] : memref<8x4xbf16, #tpu.memory_space<vmem>>, vector<8x4xbf16>
    %cst = arith.constant dense<0.000000e+00> : vector<256x4xf32>
    %4 = tpu.matmul %2, %3, %cst {dimension_numbers = #tpu.dot_dimension_numbers<[1], [0], [0], [1], [0, 0, 1, 1], [], []>} : vector<256x8xbf16>, vector<8x4xbf16>, vector<256x4xf32> -> vector<256x4xf32>
    %c0_5 = arith.constant 0 : index
    %c0_6 = arith.constant 0 : index
    %5 = vector.load %arg3[%c0_5, %c0_6] : memref<1x4xf32, #tpu.memory_space<vmem>>, vector<1x4xf32>
    %6 = vector.broadcast %5 : vector<1x4xf32> to vector<256x4xf32>
    %7 = arith.mulf %4, %6 : vector<256x4xf32>
    %c0_7 = arith.constant 0 : index
    %c0_8 = arith.constant 0 : index
    %8 = vector.load %arg4[%c0_7, %c0_8] : memref<1x4xf32, #tpu.memory_space<vmem>>, vector<1x4xf32>
    %9 = vector.broadcast %8 : vector<1x4xf32> to vector<256x4xf32>
    %10 = arith.addf %7, %9 : vector<256x4xf32>
    %cst_9 = arith.constant 0.000000e+00 : f32
    %11 = vector.broadcast %cst_9 : f32 to vector<256x4xf32>
    %12 = arith.cmpf oge, %10, %11 : vector<256x4xf32>
    %cst_10 = arith.constant 1.000000e-01 : f32
    %13 = vector.broadcast %cst_10 : f32 to vector<256x4xf32>
    %14 = arith.mulf %13, %10 : vector<256x4xf32>
    %15 = arith.select %12, %10, %14 : vector<256x4xi1>, vector<256x4xf32>
    %16 = tpu.iota {dimensions = array<i32: 1>} : vector<16x16x4xi32>
    %17 = vector.shape_cast %16 : vector<16x16x4xi32> to vector<256x4xi32>
    %cst_11 = arith.constant 0.000000e+00 : f32
    %18 = vector.broadcast %cst_11 : f32 to vector<256x4xf32>
    %c0_i32 = arith.constant 0 : i32
    %19 = vector.broadcast %c0_i32 : i32 to vector<256x4xi32>
    %20 = arith.cmpi eq, %17, %19 : vector<256x4xi32>
    %c1_i32 = arith.constant 1 : i32
    %21 = tpu.dynamic_rotate %15 by %c1_i32 dim 0 : vector<256x4xf32>, i32 -> vector<256x4xf32>
    %22 = arith.select %20, %18, %21 : vector<256x4xi1>, vector<256x4xf32>
    %c15_i32 = arith.constant 15 : i32
    %23 = vector.broadcast %c15_i32 : i32 to vector<256x4xi32>
    %24 = arith.cmpi eq, %17, %23 : vector<256x4xi32>
    %c255_i32 = arith.constant 255 : i32
    %25 = tpu.dynamic_rotate %15 by %c255_i32 dim 0 : vector<256x4xf32>, i32 -> vector<256x4xf32>
    %26 = arith.select %24, %18, %25 : vector<256x4xi1>, vector<256x4xf32>
    %27 = tpu.concatenate %22, %15, %26 in 1 : vector<256x4xf32>, vector<256x4xf32>, vector<256x4xf32> -> vector<256x12xf32>
    %28 = tpu.iota {dimensions = array<i32: 0>} : vector<256x12xi32>
    %cst_12 = arith.constant 0.000000e+00 : f32
    %29 = vector.broadcast %cst_12 : f32 to vector<256x12xf32>
    %c16_i32 = arith.constant 16 : i32
    %30 = vector.broadcast %c16_i32 : i32 to vector<256x12xi32>
    %31 = arith.cmpi slt, %28, %30 : vector<256x12xi32>
    %c16_i32_13 = arith.constant 16 : i32
    %32 = tpu.dynamic_rotate %27 by %c16_i32_13 dim 0 : vector<256x12xf32>, i32 -> vector<256x12xf32>
    %33 = arith.select %31, %29, %32 : vector<256x12xi1>, vector<256x12xf32>
    %c240_i32 = arith.constant 240 : i32
    %34 = vector.broadcast %c240_i32 : i32 to vector<256x12xi32>
    %35 = arith.cmpi sge, %28, %34 : vector<256x12xi32>
    %c240_i32_14 = arith.constant 240 : i32
    %36 = tpu.dynamic_rotate %27 by %c240_i32_14 dim 0 : vector<256x12xf32>, i32 -> vector<256x12xf32>
    %37 = arith.select %35, %29, %36 : vector<256x12xi1>, vector<256x12xf32>
    %38 = tpu.concatenate %33, %27, %37 in 1 : vector<256x12xf32>, vector<256x12xf32>, vector<256x12xf32> -> vector<256x36xf32>
    %39 = arith.truncf %38 : vector<256x36xf32> to vector<256x36xbf16>
    %c0_15 = arith.constant 0 : index
    %c0_16 = arith.constant 0 : index
    %40 = vector.load %arg5[%c0_15, %c0_16] : memref<36x8xbf16, #tpu.memory_space<vmem>>, vector<36x8xbf16>
    %cst_17 = arith.constant dense<0.000000e+00> : vector<256x8xf32>
    %41 = tpu.matmul %39, %40, %cst_17 {dimension_numbers = #tpu.dot_dimension_numbers<[1], [0], [0], [1], [0, 0, 1, 1], [], []>} : vector<256x36xbf16>, vector<36x8xbf16>, vector<256x8xf32> -> vector<256x8xf32>
    %c0_18 = arith.constant 0 : index
    %c0_19 = arith.constant 0 : index
    %42 = vector.load %arg6[%c0_18, %c0_19] : memref<1x8xf32, #tpu.memory_space<vmem>>, vector<1x8xf32>
    %43 = vector.broadcast %42 : vector<1x8xf32> to vector<256x8xf32>
    %44 = arith.mulf %41, %43 : vector<256x8xf32>
    %c0_20 = arith.constant 0 : index
    %c0_21 = arith.constant 0 : index
    %45 = vector.load %arg7[%c0_20, %c0_21] : memref<1x8xf32, #tpu.memory_space<vmem>>, vector<1x8xf32>
    %46 = vector.broadcast %45 : vector<1x8xf32> to vector<256x8xf32>
    %47 = arith.addf %44, %46 : vector<256x8xf32>
    %cst_22 = arith.constant 0.000000e+00 : f32
    %48 = vector.broadcast %cst_22 : f32 to vector<256x8xf32>
    %49 = arith.cmpf oge, %47, %48 : vector<256x8xf32>
    %cst_23 = arith.constant 1.000000e-01 : f32
    %50 = vector.broadcast %cst_23 : f32 to vector<256x8xf32>
    %51 = arith.mulf %50, %47 : vector<256x8xf32>
    %52 = arith.select %49, %47, %51 : vector<256x8xi1>, vector<256x8xf32>
    %53 = arith.extf %2 : vector<256x8xbf16> to vector<256x8xf32>
    %54 = arith.addf %52, %53 : vector<256x8xf32>
    %55 = vector.shape_cast %54 : vector<256x8xf32> to vector<16x16x8xf32>
    %c0_24 = arith.constant 0 : index
    %c0_25 = arith.constant 0 : index
    %c0_26 = arith.constant 0 : index
    %c0_27 = arith.constant 0 : index
    %56 = vector.load %arg8[%c0_24, %c0_25, %c0_26, %c0_27] : memref<1x16x16x8xf32, #tpu.memory_space<vmem>>, vector<1x16x16x8xf32>
    %57 = vector.shape_cast %56 : vector<1x16x16x8xf32> to vector<16x16x8xf32>
    %58 = vector.shape_cast %55 : vector<16x16x8xf32> to vector<1x16x16x8xf32>
    tpu.vector_store %arg8[%c0_24, %c0_25, %c0_26, %c0_27], %58 {strides = array<i32>} : memref<1x16x16x8xf32, #tpu.memory_space<vmem>>, vector<1x16x16x8xf32>,
    return
  }
  func.func @transform_0(%arg0: i32) -> (i32, i32, i32, i32) {
    %c0_i32 = arith.constant 0 : i32
    %c0_i32_0 = arith.constant 0 : i32
    %c0_i32_1 = arith.constant 0 : i32
    %c0_i32_2 = arith.constant 0 : i32
    return %arg0, %c0_i32, %c0_i32_0, %c0_i32_1 : i32, i32, i32, i32
  }
  func.func @transform_1(%arg0: i32) -> (i32, i32) {
    %c0_i32 = arith.constant 0 : i32
    %c0_i32_0 = arith.constant 0 : i32
    %c0_i32_1 = arith.constant 0 : i32
    return %c0_i32, %c0_i32_0 : i32, i32
  }
  func.func @transform_2(%arg0: i32) -> (i32, i32) {
    %c0_i32 = arith.constant 0 : i32
    %c0_i32_0 = arith.constant 0 : i32
    %c0_i32_1 = arith.constant 0 : i32
    return %c0_i32, %c0_i32_0 : i32, i32
  }
  func.func @transform_3(%arg0: i32) -> (i32, i32) {
    %c0_i32 = arith.constant 0 : i32
    %c0_i32_0 = arith.constant 0 : i32
    %c0_i32_1 = arith.constant 0 : i32
    return %c0_i32, %c0_i32_0 : i32, i32
  }
  func.func @transform_4(%arg0: i32) -> (i32, i32) {
    %c0_i32 = arith.constant 0 : i32
    %c0_i32_0 = arith.constant 0 : i32
    %c0_i32_1 = arith.constant 0 : i32
    return %c0_i32, %c0_i32_0 : i32, i32
  }
  func.func @transform_5(%arg0: i32) -> (i32, i32) {
    %c0_i32 = arith.constant 0 : i32
    %c0_i32_0 = arith.constant 0 : i32
    %c0_i32_1 = arith.constant 0 : i32
    return %c0_i32, %c0_i32_0 : i32, i32
  }
  func.func @transform_6(%arg0: i32) -> (i32, i32) {
    %c0_i32 = arith.constant 0 : i32
    %c0_i32_0 = arith.constant 0 : i32
    %c0_i32_1 = arith.constant 0 : i32
    return %c0_i32, %c0_i32_0 : i32, i32
  }
  func.func @transform_7(%arg0: i32) -> (i32, i32, i32, i32) {
    %c0_i32 = arith.constant 0 : i32
    %c0_i32_0 = arith.constant 0 : i32
    %c0_i32_1 = arith.constant 0 : i32
    %c0_i32_2 = arith.constant 0 : i32
    return %arg0, %c0_i32, %c0_i32_0, %c0_i32_1 : i32, i32, i32, i32
  }
}

</mosaic_0001>

<llo_original>
// kernel: resblock_forward.1
$region0: #{resblock_forward.1}
  #allocation0 [shape = 'u32[]', space=smem, size = 0x4, offset = 0x4, fixed_abs, tag = 'smem constant byte address 0x4 - core index']
  #allocation1 [shape = 'u32[72,128]{1,0:T(1,128)}', space=vmem, size = 0x9000, scoped, tag = 'internal scratch']
  %s0 = inlined_call_operand.vmem [shape: bf16[2,16,16,8], index: 0, kind: input, shape index: {}]
  %s1 = inlined_call_operand.vmem [shape: bf16[8,4], index: 1, kind: input, shape index: {}]
  %s2 = inlined_call_operand.vmem [shape: f32[1,4], index: 2, kind: input, shape index: {}]
  %s3 = inlined_call_operand.vmem [shape: f32[1,4], index: 3, kind: input, shape index: {}]
  %s4 = inlined_call_operand.vmem [shape: bf16[36,8], index: 4, kind: input, shape index: {}]
  %s5 = inlined_call_operand.vmem [shape: f32[1,8], index: 5, kind: input, shape index: {}]
  %s6 = inlined_call_operand.vmem [shape: f32[1,8], index: 6, kind: input, shape index: {}]
  %s7 = inlined_call_operand.vmem [shape: f32[2,16,16,8], index: 7, kind: output, shape index: {}]
  %s8 = sld [smem:[#allocation0]]
  $region61: #{resblock_forward.1} parent=0
    _
  %s10 = ssub.s32 1, %s8
  %s11 = scalar_select 0, %s10, %s8
  loop: start=0, step=1, limit=4
  $region2: #{resblock_forward.1} parent=0 // loop_pre_header
    _
  $region3: #{resblock_forward.1} parent=0 // loop_header
    %s13 = sphi 0, %s17
    %p14 = scmp.ge.s32.totalorder %s13, 4
    %s23 = sphi 0, %s25
    %s26 = sphi 0, %s23
    %s27 = sphi 0, %s26
    %s43 = sphi 0, %s27
    %s47 = sphi 0, %s47
    %s49 = sphi 0, %s47
    %s50 = sphi 0, %s49
    %s64 = sphi 0, %s50
    %s68 = sphi 0, %s68
    %s70 = sphi 0, %s68
    %s71 = sphi 0, %s70
    %s85 = sphi 0, %s71
    %s89 = sphi 0, %s89
    %s91 = sphi 0, %s89
    %s92 = sphi 0, %s91
    %s106 = sphi 0, %s92
    %s110 = sphi 0, %s110
    %s112 = sphi 0, %s110
    %s113 = sphi 0, %s112
    %s127 = sphi 0, %s113
    %s131 = sphi 0, %s131
    %s133 = sphi 0, %s131
    %s134 = sphi 0, %s133
    %s148 = sphi 0, %s134
    %s152 = sphi 0, %s152
    %s154 = sphi 0, %s152
    %s155 = sphi 0, %s154
    %s169 = sphi 0, %s155
    %s175 = sphi 0, %s177
    %s178 = sphi 0, %s175
    %s179 = sphi 0, %s178
    %s195 = sphi 0, %s179
  $region4: #{resblock_forward.1} parent=0 // loop_header_branch
    %16 = sbr.rel (%p14) target = $region8
  $region5: #{resblock_forward.1} parent=0 // loop_body
    %s18 = ssub.s32 %s13, 1
    %s19 = ssub.s32 %s13, 2
    %s20 = sadd.s32 %s13, 1
    %s21 = ssub.s32 %s13, %s20
    %p22 = scmp.eq.s32.totalorder %s21, 0
    %s24 = sadd.s32 %s23, 1
    %s25 = scalar_select %p22, %s23, %s24
    %p28 = pneg %p22
    %p29 = scmp.eq.s32.totalorder %s13, 1
    %p30 = por %p28, %p29
    %p31 = scmp.ne.s32.totalorder %s23, %s26
    %p32 = scmp.eq.s32.totalorder %s13, 0
    %p33 = por %p31, %p32
    %p34 = scmp.ne.s32.totalorder %s23, %s26
    %p35 = scmp.eq.s32.totalorder %s18, 1
    %p36 = por %p34, %p35
    %p37 = scmp.ne.s32.totalorder %s26, %s27
    %p38 = scmp.eq.s32.totalorder %s18, 0
    %p39 = por %p37, %p38
    %p40 = scmp.ne.s32.totalorder %s26, %s27
    %p41 = scmp.eq.s32.totalorder %s19, 1
    %p42 = por %p40, %p41
    %p44 = scmp.ne.s32.totalorder %s27, %s43
    %p45 = scmp.eq.s32.totalorder %s19, 0
    %p46 = por %p44, %p45
    %s48 = sadd.s32 %s47, 1
    %p51 = scmp.eq.s32.totalorder %s13, 1
    %p52 = scmp.ne.s32.totalorder %s47, %s49
    %p53 = scmp.eq.s32.totalorder %s13, 0
    %p54 = por %p52, %p53
    %p55 = scmp.ne.s32.totalorder %s47, %s49
    %p56 = scmp.eq.s32.totalorder %s18, 1
    %p57 = por %p55, %p56
    %p58 = scmp.ne.s32.totalorder %s49, %s50
    %p59 = scmp.eq.s32.totalorder %s18, 0
    %p60 = por %p58, %p59
    %p61 = scmp.ne.s32.totalorder %s49, %s50
    %p62 = scmp.eq.s32.totalorder %s19, 1
    %p63 = por %p61, %p62
    %p65 = scmp.ne.s32.totalorder %s50, %s64
    %p66 = scmp.eq.s32.totalorder %s19, 0
    %p67 = por %p65, %p66
    %s69 = sadd.s32 %s68, 1
    %p72 = scmp.eq.s32.totalorder %s13, 1
    %p73 = scmp.ne.s32.totalorder %s68, %s70
    %p74 = scmp.eq.s32.totalorder %s13, 0
    %p75 = por %p73, %p74
    %p76 = scmp.ne.s32.totalorder %s68, %s70
    %p77 = scmp.eq.s32.totalorder %s18, 1
    %p78 = por %p76, %p77
    %p79 = scmp.ne.s32.totalorder %s70, %s71
    %p80 = scmp.eq.s32.totalorder %s18, 0
    %p81 = por %p79, %p80
    %p82 = scmp.ne.s32.totalorder %s70, %s71
    %p83 = scmp.eq.s32.totalorder %s19, 1
    %p84 = por %p82, %p83
    %p86 = scmp.ne.s32.totalorder %s71, %s85
    %p87 = scmp.eq.s32.totalorder %s19, 0
    %p88 = por %p86, %p87
    %s90 = sadd.s32 %s89, 1
    %p93 = scmp.eq.s32.totalorder %s13, 1
    %p94 = scmp.ne.s32.totalorder %s89, %s91
    %p95 = scmp.eq.s32.totalorder %s13, 0
    %p96 = por %p94, %p95
    %p97 = scmp.ne.s32.totalorder %s89, %s91
    %p98 = scmp.eq.s32.totalorder %s18, 1
    %p99 = por %p97, %p98
    %p100 = scmp.ne.s32.totalorder %s91, %s92
    %p101 = scmp.eq.s32.totalorder %s18, 0
    %p102 = por %p100, %p101
    %p103 = scmp.ne.s32.totalorder %s91, %s92
    %p104 = scmp.eq.s32.totalorder %s19, 1
    %p105 = por %p103, %p104
    %p107 = scmp.ne.s32.totalorder %s92, %s106
    %p108 = scmp.eq.s32.totalorder %s19, 0
    %p109 = por %p107, %p108
    %s111 = sadd.s32 %s110, 1
    %p114 = scmp.eq.s32.totalorder %s13, 1
    %p115 = scmp.ne.s32.totalorder %s110, %s112
    %p116 = scmp.eq.s32.totalorder %s13, 0
    %p117 = por %p115, %p116
    %p118 = scmp.ne.s32.totalorder %s110, %s112
    %p119 = scmp.eq.s32.totalorder %s18, 1
    %p120 = por %p118, %p119
    %p121 = scmp.ne.s32.totalorder %s112, %s113
    %p122 = scmp.eq.s32.totalorder %s18, 0
    %p123 = por %p121, %p122
    %p124 = scmp.ne.s32.totalorder %s112, %s113
    %p125 = scmp.eq.s32.totalorder %s19, 1
    %p126 = por %p124, %p125
    %p128 = scmp.ne.s32.totalorder %s113, %s127
    %p129 = scmp.eq.s32.totalorder %s19, 0
    %p130 = por %p128, %p129
    %s132 = sadd.s32 %s131, 1
    %p135 = scmp.eq.s32.totalorder %s13, 1
    %p136 = scmp.ne.s32.totalorder %s131, %s133
    %p137 = scmp.eq.s32.totalorder %s13, 0
    %p138 = por %p136, %p137
    %p139 = scmp.ne.s32.totalorder %s131, %s133
    %p140 = scmp.eq.s32.totalorder %s18, 1
    %p141 = por %p139, %p140
    %p142 = scmp.ne.s32.totalorder %s133, %s134
    %p143 = scmp.eq.s32.totalorder %s18, 0
    %p144 = por %p142, %p143
    %p145 = scmp.ne.s32.totalorder %s133, %s134
    %p146 = scmp.eq.s32.totalorder %s19, 1
    %p147 = por %p145, %p146
    %p149 = scmp.ne.s32.totalorder %s134, %s148
    %p150 = scmp.eq.s32.totalorder %s19, 0
    %p151 = por %p149, %p150
    %s153 = sadd.s32 %s152, 1
    %p156 = scmp.eq.s32.totalorder %s13, 1
    %p157 = scmp.ne.s32.totalorder %s152, %s154
    %p158 = scmp.eq.s32.totalorder %s13, 0
    %p159 = por %p157, %p158
    %p160 = scmp.ne.s32.totalorder %s152, %s154
    %p161 = scmp.eq.s32.totalorder %s18, 1
    %p162 = por %p160, %p161
    %p163 = scmp.ne.s32.totalorder %s154, %s155
    %p164 = scmp.eq.s32.totalorder %s18, 0
    %p165 = por %p163, %p164
    %p166 = scmp.ne.s32.totalorder %s154, %s155
    %p167 = scmp.eq.s32.totalorder %s19, 1
    %p168 = por %p166, %p167
    %p170 = scmp.ne.s32.totalorder %s155, %s169
    %p171 = scmp.eq.s32.totalorder %s19, 0
    %p172 = por %p170, %p171
    %s173 = ssub.s32 %s13, %s20
    %p174 = scmp.eq.s32.totalorder %s173, 0
    %s176 = sadd.s32 %s175, 1
    %s177 = scalar_select %p174, %s175, %s176
    %p180 = pneg %p174
    %p181 = scmp.eq.s32.totalorder %s13, 1
    %p182 = por %p180, %p181
    %p183 = scmp.ne.s32.totalorder %s175, %s178
    %p184 = scmp.eq.s32.totalorder %s13, 0
    %p185 = por %p183, %p184
    %p186 = scmp.ne.s32.totalorder %s175, %s178
    %p187 = scmp.eq.s32.totalorder %s18, 1
    %p188 = por %p186, %p187
    %p189 = scmp.ne.s32.totalorder %s178, %s179
    %p190 = scmp.eq.s32.totalorder %s18, 0
    %p191 = por %p189, %p190
    %p192 = scmp.ne.s32.totalorder %s178, %s179
    %p193 = scmp.eq.s32.totalorder %s19, 1
    %p194 = por %p192, %p193
    %p196 = scmp.ne.s32.totalorder %s179, %s195
    %p197 = scmp.eq.s32.totalorder %s19, 0
    %p198 = por %p196, %p197
    %p199 = scmp.le.s32.totalorder 1, %s13
    %p200 = scmp.lt.s32.totalorder %s13, 3
    %p201 = pnand %p199, %p200
    %p202 = pneg %p201
    // Predicated region
    $region9: #{resblock_forward.1} parent=5 // pred_check
      _
    $region10: #{resblock_forward.1} parent=5 // pred_check_branch
      %204 = sbr.rel (%p201) target = $region12
    $region11: #{resblock_forward.1} parent=5 // pred_region
      %s205 = ssub.s32 %s13, 1
      // Predicated region
      $region13: #{resblock_forward.1} parent=11 // pred_check
        %p206 = pneg %p60
      $region14: #{resblock_forward.1} parent=11 // pred_check_branch
        %208 = sbr.rel (%p206) target = $region16
      $region15: #{resblock_forward.1} parent=11 // pred_region
        _
      $region16: #{resblock_forward.1} parent=11 // pred_fallthru
        _
      // Predicated region
      $region17: #{resblock_forward.1} parent=11 // pred_check
        %p209 = pneg %p81
      $region18: #{resblock_forward.1} parent=11 // pred_check_branch
        %211 = sbr.rel (%p209) target = $region20
      $region19: #{resblock_forward.1} parent=11 // pred_region
        _
      $region20: #{resblock_forward.1} parent=11 // pred_fallthru
        _
      // Predicated region
      $region21: #{resblock_forward.1} parent=11 // pred_check
        %p212 = pneg %p102
      $region22: #{resblock_forward.1} parent=11 // pred_check_branch
        %214 = sbr.rel (%p212) target = $region24
      $region23: #{resblock_forward.1} parent=11 // pred_region
        _
      $region24: #{resblock_forward.1} parent=11 // pred_fallthru
        _
      // Predicated region
      $region25: #{resblock_forward.1} parent=11 // pred_check
        %p215 = pneg %p123
      $region26: #{resblock_forward.1} parent=11 // pred_check_branch
        %217 = sbr.rel (%p215) target = $region28
      $region27: #{resblock_forward.1} parent=11 // pred_region
        _
      $region28: #{resblock_forward.1} parent=11 // pred_fallthru
        _
      // Predicated region
      $region29: #{resblock_forward.1} parent=11 // pred_check
        %p218 = pneg %p144
      $region30: #{resblock_forward.1} parent=11 // pred_check_branch
        %220 = sbr.rel (%p218) target = $region32
      $region31: #{resblock_forward.1} parent=11 // pred_region
        _
      $region32: #{resblock_forward.1} parent=11 // pred_fallthru
        _
      // Predicated region
      $region33: #{resblock_forward.1} parent=11 // pred_check
        %p221 = pneg %p165
      $region34: #{resblock_forward.1} parent=11 // pred_check_branch
        %223 = sbr.rel (%p221) target = $region36
      $region35: #{resblock_forward.1} parent=11 // pred_region
        _
      $region36: #{resblock_forward.1} parent=11 // pred_fallthru
        _
    $region12: #{resblock_forward.1} parent=5 // pred_fallthru
      _
    %p224 = scmp.lt.s32.totalorder %s13, 2
    // Predicated region
    $region37: #{resblock_forward.1} parent=5 // pred_check
      %p225 = pneg %p224
    $region38: #{resblock_forward.1} parent=5 // pred_check_branch
      %227 = sbr.rel (%p225) target = $region40
    $region39: #{resblock_forward.1} parent=5 // pred_region
      // Predicated region
      $region41: #{resblock_forward.1} parent=39 // pred_check
        %p228 = pneg %p33
      $region42: #{resblock_forward.1} parent=39 // pred_check_branch
        %230 = sbr.rel (%p228) target = $region44
      $region43: #{resblock_forward.1} parent=39 // pred_region
        %p231 = scmp.lt.s32.totalorder %s13, 1
        %s232 = scalar_select %p231, %s13, 1
        %s233 = smul.addr %s232, 32
        %s234 = smul.addr %s233, 4
        %s235 = scalar_lea.vmem %s0, %s234
      $region44: #{resblock_forward.1} parent=39 // pred_fallthru
        _
    $region40: #{resblock_forward.1} parent=5 // pred_fallthru
      _
    %p236 = scmp.le.s32.totalorder 1, %s13
    %p237 = scmp.lt.s32.totalorder %s13, 3
    %p238 = pnand %p236, %p237
    %p239 = pneg %p238
    // Predicated region
    $region45: #{resblock_forward.1} parent=5 // pred_check
      _
    $region46: #{resblock_forward.1} parent=5 // pred_check_branch
      %241 = sbr.rel (%p238) target = $region48
    $region47: #{resblock_forward.1} parent=5 // pred_region
      %s242 = ssub.s32 %s13, 1
      %p243 = scmp.lt.s32.totalorder %s18, 1
      %s244 = scalar_select %p243, %s18, 1
      %s245 = smul.addr %s244, 32
      %s246 = smul.addr %s245, 4
      %s247 = scalar_lea.vmem %s0, %s246
      %p248 = pneg %p39
      %p249 = pneg %p36
      %p250 = pneg %p60
      %p251 = pneg %p57
      %p252 = pneg %p81
      %p253 = pneg %p78
      %p254 = pneg %p102
      %p255 = pneg %p99
      %p256 = pneg %p123
      %p257 = pneg %p120
      %p258 = pneg %p144
      %p259 = pneg %p141
      %p260 = pneg %p165
      %p261 = pneg %p162
      %p262 = pneg %p191
      %p263 = pneg %p188
      %p264 = scmp.lt.s32.totalorder %s18, 1
      %s265 = scalar_select %p264, %s18, 1
      %s266 = smul.addr %s265, 32
      %s267 = smul.addr %s266, 8
      %s268 = scalar_lea.vmem %s7, %s267
      %p269 = scmp.lt.s32.totalorder %s18, 1
      %s270 = scalar_select %p269, %s18, 1
      %s271 = smul.addr %s270, 32
      %s272 = smul.addr %s271, 4
      %s273 = scalar_lea.vmem %s0, %s272
      %p274 = scmp.lt.s32.totalorder %s18, 1
      %s275 = scalar_select %p274, %s18, 1
      %s276 = smul.addr %s275, 32
      %s277 = smul.addr %s276, 8
      %s278 = scalar_lea.vmem %s7, %s277
      %v280 = vld [vmem:[%s273] sm:$0xf]
      %v281 = vld [vmem:[%s273 + $0x4] sm:$0xf]
      %v282 = vld [vmem:[%s273 + $0x8] sm:$0xf]
      %v283 = vld [vmem:[%s273 + $0xc] sm:$0xf]
      %v284 = vld [vmem:[%s273 + $0x10] sm:$0xf]
      %v285 = vld [vmem:[%s273 + $0x14] sm:$0xf]
      %v286 = vld [vmem:[%s273 + $0x18] sm:$0xf]
      %v287 = vld [vmem:[%s273 + $0x1c] sm:$0xf]
      %v288 = vld [vmem:[%s273 + $0x20] sm:$0xf]
      %v289 = vld [vmem:[%s273 + $0x24] sm:$0xf]
      %v290 = vld [vmem:[%s273 + $0x28] sm:$0xf]
      %v291 = vld [vmem:[%s273 + $0x2c] sm:$0xf]
      %v292 = vld [vmem:[%s273 + $0x30] sm:$0xf]
      %v293 = vld [vmem:[%s273 + $0x34] sm:$0xf]
      %v294 = vld [vmem:[%s273 + $0x38] sm:$0xf]
      %v295 = vld [vmem:[%s273 + $0x3c] sm:$0xf]
      %v296 = vld [vmem:[%s273 + $0x40] sm:$0xf]
      %v297 = vld [vmem:[%s273 + $0x44] sm:$0xf]
      %v298 = vld [vmem:[%s273 + $0x48] sm:$0xf]
      %v299 = vld [vmem:[%s273 + $0x4c] sm:$0xf]
      %v300 = vld [vmem:[%s273 + $0x50] sm:$0xf]
      %v301 = vld [vmem:[%s273 + $0x54] sm:$0xf]
      %v302 = vld [vmem:[%s273 + $0x58] sm:$0xf]
      %v303 = vld [vmem:[%s273 + $0x5c] sm:$0xf]
      %v304 = vld [vmem:[%s273 + $0x60] sm:$0xf]
      %v305 = vld [vmem:[%s273 + $0x64] sm:$0xf]
      %v306 = vld [vmem:[%s273 + $0x68] sm:$0xf]
      %v307 = vld [vmem:[%s273 + $0x6c] sm:$0xf]
      %v308 = vld [vmem:[%s273 + $0x70] sm:$0xf]
      %v309 = vld [vmem:[%s273 + $0x74] sm:$0xf]
      %v310 = vld [vmem:[%s273 + $0x78] sm:$0xf]
      %v311 = vld [vmem:[%s273 + $0x7c] sm:$0xf]
      %v312 = vld [vmem:[%s1] sm:$0xf]
      %v345 = vunpack.c.l.b16 %v280
      %v346 = vunpack.c.l.b16 %v281
      %v347 = vunpack.c.l.b16 %v282
      %v348 = vunpack.c.l.b16 %v283
      %v349 = vunpack.c.l.b16 %v284
      %v350 = vunpack.c.l.b16 %v285
      %v351 = vunpack.c.l.b16 %v286
      %v352 = vunpack.c.l.b16 %v287
      %v353 = vunpack.c.l.b16 %v288
      %v354 = vunpack.c.l.b16 %v289
      %v355 = vunpack.c.l.b16 %v290
      %v356 = vunpack.c.l.b16 %v291
      %v357 = vunpack.c.l.b16 %v292
      %v358 = vunpack.c.l.b16 %v293
      %v359 = vunpack.c.l.b16 %v294
      %v360 = vunpack.c.l.b16 %v295
      %v361 = vunpack.c.l.b16 %v296
      %v362 = vunpack.c.l.b16 %v297
      %v363 = vunpack.c.l.b16 %v298
      %v364 = vunpack.c.l.b16 %v299
      %v365 = vunpack.c.l.b16 %v300
      %v366 = vunpack.c.l.b16 %v301
      %v367 = vunpack.c.l.b16 %v302
      %v368 = vunpack.c.l.b16 %v303
      %v369 = vunpack.c.l.b16 %v304
      %v370 = vunpack.c.l.b16 %v305
      %v371 = vunpack.c.l.b16 %v306
      %v372 = vunpack.c.l.b16 %v307
      %v373 = vunpack.c.l.b16 %v308
      %v374 = vunpack.c.l.b16 %v309
      %v375 = vunpack.c.l.b16 %v310
      %v376 = vunpack.c.l.b16 %v311
      %v377 = vpack.c.b16 %v346, %v345
      %v378 = vpack.c.b16 %v348, %v347
      %v379 = vpack.c.b16 %v350, %v349
      %v380 = vpack.c.b16 %v352, %v351
      %v381 = vpack.c.b16 %v354, %v353
      %v382 = vpack.c.b16 %v356, %v355
      %v383 = vpack.c.b16 %v358, %v357
      %v384 = vpack.c.b16 %v360, %v359
      %v385 = vpack.c.b16 %v362, %v361
      %v386 = vpack.c.b16 %v364, %v363
      %v387 = vpack.c.b16 %v366, %v365
      %v388 = vpack.c.b16 %v368, %v367
      %v389 = vpack.c.b16 %v370, %v369
      %v390 = vpack.c.b16 %v372, %v371
      %v391 = vpack.c.b16 %v374, %v373
      %v392 = vpack.c.b16 %v376, %v375
      %vm393 = vcmask 64512
      %v395 = vsel %vm393, %v377, 0
      %v398 = vsel %vm393, %v378, 0
      %v401 = vsel %vm393, %v379, 0
      %v404 = vsel %vm393, %v380, 0
      %v407 = vsel %vm393, %v381, 0
      %v410 = vsel %vm393, %v382, 0
      %v413 = vsel %vm393, %v383, 0
      %v416 = vsel %vm393, %v384, 0
      %v419 = vsel %vm393, %v385, 0
      %v422 = vsel %vm393, %v386, 0
      %v425 = vsel %vm393, %v387, 0
      %v428 = vsel %vm393, %v388, 0
      %v431 = vsel %vm393, %v389, 0
      %v434 = vsel %vm393, %v390, 0
      %v437 = vsel %vm393, %v391, 0
      %v440 = vsel %vm393, %v392, 0
      %vm442 = vcmask 1043456
      %v444 = vsel %vm442, %v312, 0
      %446 = vmatpush.bf16.msra.mxu0 0
      %447 = vmatpush.bf16.msra.mxu0 0
      %448 = vmatpush.bf16.msra.mxu0 0
      %449 = vmatpush.bf16.msra.mxu0 0
      %450 = vmatpush.bf16.msra.mxu0 0
      %451 = vmatpush.bf16.msra.mxu0 0
      %452 = vmatpush.bf16.msra.mxu0 0
      %453 = vmatpush.bf16.msra.mxu0 %v444
      %454 = vmatmul.bf16.gmra.mxu0 %v395
      %v455 = vpop.f32.mrf.mxu0
      %v456 = vadd.f32 0.0, %v455
      %v457 = vpop.f32.mrf.mxu0
      %v458 = vadd.f32 0.0, %v457
      %459 = vmatmul.bf16.gmra.mxu0 %v398
      %v460 = vpop.f32.mrf.mxu0
      %v461 = vadd.f32 0.0, %v460
      %v462 = vpop.f32.mrf.mxu0
      %v463 = vadd.f32 0.0, %v462
      %464 = vmatmul.bf16.gmra.mxu0 %v401
      %v465 = vpop.f32.mrf.mxu0
      %v466 = vadd.f32 0.0, %v465
      %v467 = vpop.f32.mrf.mxu0
      %v468 = vadd.f32 0.0, %v467
      %469 = vmatmul.bf16.gmra.mxu0 %v404
      %v470 = vpop.f32.mrf.mxu0
      %v471 = vadd.f32 0.0, %v470
      %v472 = vpop.f32.mrf.mxu0
      %v473 = vadd.f32 0.0, %v472
      %474 = vmatmul.bf16.gmra.mxu0 %v407
      %v475 = vpop.f32.mrf.mxu0
      %v476 = vadd.f32 0.0, %v475
      %v477 = vpop.f32.mrf.mxu0
      %v478 = vadd.f32 0.0, %v477
      %479 = vmatmul.bf16.gmra.mxu0 %v410
      %v480 = vpop.f32.mrf.mxu0
      %v481 = vadd.f32 0.0, %v480
      %v482 = vpop.f32.mrf.mxu0
      %v483 = vadd.f32 0.0, %v482
      %484 = vmatmul.bf16.gmra.mxu0 %v413
      %v485 = vpop.f32.mrf.mxu0
      %v486 = vadd.f32 0.0, %v485
      %v487 = vpop.f32.mrf.mxu0
      %v488 = vadd.f32 0.0, %v487
      %489 = vmatmul.bf16.gmra.mxu0 %v416
      %v490 = vpop.f32.mrf.mxu0
      %v491 = vadd.f32 0.0, %v490
      %v492 = vpop.f32.mrf.mxu0
      %v493 = vadd.f32 0.0, %v492
      %494 = vmatmul.bf16.gmra.mxu0 %v419
      %v495 = vpop.f32.mrf.mxu0
      %v496 = vadd.f32 0.0, %v495
      %v497 = vpop.f32.mrf.mxu0
      %v498 = vadd.f32 0.0, %v497
      %499 = vmatmul.bf16.gmra.mxu0 %v422
      %v500 = vpop.f32.mrf.mxu0
      %v501 = vadd.f32 0.0, %v500
      %v502 = vpop.f32.mrf.mxu0
      %v503 = vadd.f32 0.0, %v502
      %504 = vmatmul.bf16.gmra.mxu0 %v425
      %v505 = vpop.f32.mrf.mxu0
      %v506 = vadd.f32 0.0, %v505
      %v507 = vpop.f32.mrf.mxu0
      %v508 = vadd.f32 0.0, %v507
      %509 = vmatmul.bf16.gmra.mxu0 %v428
      %v510 = vpop.f32.mrf.mxu0
      %v511 = vadd.f32 0.0, %v510
      %v512 = vpop.f32.mrf.mxu0
      %v513 = vadd.f32 0.0, %v512
      %514 = vmatmul.bf16.gmra.mxu0 %v431
      %v515 = vpop.f32.mrf.mxu0
      %v516 = vadd.f32 0.0, %v515
      %v517 = vpop.f32.mrf.mxu0
      %v518 = vadd.f32 0.0, %v517
      %519 = vmatmul.bf16.gmra.mxu0 %v434
      %v520 = vpop.f32.mrf.mxu0
      %v521 = vadd.f32 0.0, %v520
      %v522 = vpop.f32.mrf.mxu0
      %v523 = vadd.f32 0.0, %v522
      %524 = vmatmul.bf16.gmra.mxu0 %v437
      %v525 = vpop.f32.mrf.mxu0
      %v526 = vadd.f32 0.0, %v525
      %v527 = vpop.f32.mrf.mxu0
      %v528 = vadd.f32 0.0, %v527
      %529 = vmatmul.bf16.gmra.mxu0 %v440
      %v530 = vpop.f32.mrf.mxu0
      %v531 = vadd.f32 0.0, %v530
      %v532 = vpop.f32.mrf.mxu0
      %v533 = vadd.f32 0.0, %v532
      %534 = vdwg.mxu0
      %v535 = vld [vmem:[%s2] sm:$0x1]
      %v537 = vperm.slane %v535, 0
      %v539 = vmul.f32 %v456, %v537
      %v540 = vmul.f32 %v458, %v537
      %v541 = vmul.f32 %v461, %v537
      %v542 = vmul.f32 %v463, %v537
      %v543 = vmul.f32 %v466, %v537
      %v544 = vmul.f32 %v468, %v537
      %v545 = vmul.f32 %v471, %v537
      %v546 = vmul.f32 %v473, %v537
      %v547 = vmul.f32 %v476, %v537
      %v548 = vmul.f32 %v478, %v537
      %v549 = vmul.f32 %v481, %v537
      %v550 = vmul.f32 %v483, %v537
      %v551 = vmul.f32 %v486, %v537
      %v552 = vmul.f32 %v488, %v537
      %v553 = vmul.f32 %v491, %v537
      %v554 = vmul.f32 %v493, %v537
      %v555 = vmul.f32 %v496, %v537
      %v556 = vmul.f32 %v498, %v537
      %v557 = vmul.f32 %v501, %v537
      %v558 = vmul.f32 %v503, %v537
      %v559 = vmul.f32 %v506, %v537
      %v560 = vmul.f32 %v508, %v537
      %v561 = vmul.f32 %v511, %v537
      %v562 = vmul.f32 %v513, %v537
      %v563 = vmul.f32 %v516, %v537
      %v564 = vmul.f32 %v518, %v537
      %v565 = vmul.f32 %v521, %v537
      %v566 = vmul.f32 %v523, %v537
      %v567 = vmul.f32 %v526, %v537
      %v568 = vmul.f32 %v528, %v537
      %v569 = vmul.f32 %v531, %v537
      %v570 = vmul.f32 %v533, %v537
      %v571 = vld [vmem:[%s3] sm:$0x1]
      %v573 = vperm.slane %v571, 0
      %v575 = vadd.f32 %v539, %v573
      %v576 = vadd.f32 %v540, %v573
      %v577 = vadd.f32 %v541, %v573
      %v578 = vadd.f32 %v542, %v573
      %v579 = vadd.f32 %v543, %v573
      %v580 = vadd.f32 %v544, %v573
      %v581 = vadd.f32 %v545, %v573
      %v582 = vadd.f32 %v546, %v573
      %v583 = vadd.f32 %v547, %v573
      %v584 = vadd.f32 %v548, %v573
      %v585 = vadd.f32 %v549, %v573
      %v586 = vadd.f32 %v550, %v573
      %v587 = vadd.f32 %v551, %v573
      %v588 = vadd.f32 %v552, %v573
      %v589 = vadd.f32 %v553, %v573
      %v590 = vadd.f32 %v554, %v573
      %v591 = vadd.f32 %v555, %v573
      %v592 = vadd.f32 %v556, %v573
      %v593 = vadd.f32 %v557, %v573
      %v594 = vadd.f32 %v558, %v573
      %v595 = vadd.f32 %v559, %v573
      %v596 = vadd.f32 %v560, %v573
      %v597 = vadd.f32 %v561, %v573
      %v598 = vadd.f32 %v562, %v573
      %v599 = vadd.f32 %v563, %v573
      %v600 = vadd.f32 %v564, %v573
      %v601 = vadd.f32 %v565, %v573
      %v602 = vadd.f32 %v566, %v573
      %v603 = vadd.f32 %v567, %v573
      %v604 = vadd.f32 %v568, %v573
      %v605 = vadd.f32 %v569, %v573
      %v606 = vadd.f32 %v570, %v573
      %vm607 = vcmp.ge.f32.partialorder %v575, 0.0
      %vm608 = vcmp.ge.f32.partialorder %v576, 0.0
      %vm609 = vcmp.ge.f32.partialorder %v577, 0.0
      %vm610 = vcmp.ge.f32.partialorder %v578, 0.0
      %vm611 = vcmp.ge.f32.partialorder %v579, 0.0
      %vm612 = vcmp.ge.f32.partialorder %v580, 0.0
      %vm613 = vcmp.ge.f32.partialorder %v581, 0.0
      %vm614 = vcmp.ge.f32.partialorder %v582, 0.0
      %vm615 = vcmp.ge.f32.partialorder %v583, 0.0
      %vm616 = vcmp.ge.f32.partialorder %v584, 0.0
      %vm617 = vcmp.ge.f32.partialorder %v585, 0.0
      %vm618 = vcmp.ge.f32.partialorder %v586, 0.0
      %vm619 = vcmp.ge.f32.partialorder %v587, 0.0
      %vm620 = vcmp.ge.f32.partialorder %v588, 0.0
      %vm621 = vcmp.ge.f32.partialorder %v589, 0.0
      %vm622 = vcmp.ge.f32.partialorder %v590, 0.0
      %vm623 = vcmp.ge.f32.partialorder %v591, 0.0
      %vm624 = vcmp.ge.f32.partialorder %v592, 0.0
      %vm625 = vcmp.ge.f32.partialorder %v593, 0.0
      %vm626 = vcmp.ge.f32.partialorder %v594, 0.0
      %vm627 = vcmp.ge.f32.partialorder %v595, 0.0
      %vm628 = vcmp.ge.f32.partialorder %v596, 0.0
      %vm629 = vcmp.ge.f32.partialorder %v597, 0.0
      %vm630 = vcmp.ge.f32.partialorder %v598, 0.0
      %vm631 = vcmp.ge.f32.partialorder %v599, 0.0
      %vm632 = vcmp.ge.f32.partialorder %v600, 0.0
      %vm633 = vcmp.ge.f32.partialorder %v601, 0.0
      %vm634 = vcmp.ge.f32.partialorder %v602, 0.0
      %vm635 = vcmp.ge.f32.partialorder %v603, 0.0
      %vm636 = vcmp.ge.f32.partialorder %v604, 0.0
      %vm637 = vcmp.ge.f32.partialorder %v605, 0.0
      %vm638 = vcmp.ge.f32.partialorder %v606, 0.0
      %v639 = vmul.f32 %v575, 0.1
      %v640 = vmul.f32 %v576, 0.1
      %v641 = vmul.f32 %v577, 0.1
      %v642 = vmul.f32 %v578, 0.1
      %v643 = vmul.f32 %v579, 0.1
      %v644 = vmul.f32 %v580, 0.1
      %v645 = vmul.f32 %v581, 0.1
      %v646 = vmul.f32 %v582, 0.1
      %v647 = vmul.f32 %v583, 0.1
      %v648 = vmul.f32 %v584, 0.1
      %v649 = vmul.f32 %v585, 0.1
      %v650 = vmul.f32 %v586, 0.1
      %v651 = vmul.f32 %v587, 0.1
      %v652 = vmul.f32 %v588, 0.1
      %v653 = vmul.f32 %v589, 0.1
      %v654 = vmul.f32 %v590, 0.1
      %v655 = vmul.f32 %v591, 0.1
      %v656 = vmul.f32 %v592, 0.1
      %v657 = vmul.f32 %v593, 0.1
      %v658 = vmul.f32 %v594, 0.1
      %v659 = vmul.f32 %v595, 0.1
      %v660 = vmul.f32 %v596, 0.1
      %v661 = vmul.f32 %v597, 0.1
      %v662 = vmul.f32 %v598, 0.1
      %v663 = vmul.f32 %v599, 0.1
      %v664 = vmul.f32 %v600, 0.1
      %v665 = vmul.f32 %v601, 0.1
      %v666 = vmul.f32 %v602, 0.1
      %v667 = vmul.f32 %v603, 0.1
      %v668 = vmul.f32 %v604, 0.1
      %v669 = vmul.f32 %v605, 0.1
      %v670 = vmul.f32 %v606, 0.1
      %v671 = vsel %vm607, %v575, %v639
      %v672 = vsel %vm608, %v576, %v640
      %v673 = vsel %vm609, %v577, %v641
      %v674 = vsel %vm610, %v578, %v642
      %v675 = vsel %vm611, %v579, %v643
      %v676 = vsel %vm612, %v580, %v644
      %v677 = vsel %vm613, %v581, %v645
      %v678 = vsel %vm614, %v582, %v646
      %v679 = vsel %vm615, %v583, %v647
      %v680 = vsel %vm616, %v584, %v648
      %v681 = vsel %vm617, %v585, %v649
      %v682 = vsel %vm618, %v586, %v650
      %v683 = vsel %vm619, %v587, %v651
      %v684 = vsel %vm620, %v588, %v652
      %v685 = vsel %vm621, %v589, %v653
      %v686 = vsel %vm622, %v590, %v654
      %v687 = vsel %vm623, %v591, %v655
      %v688 = vsel %vm624, %v592, %v656
      %v689 = vsel %vm625, %v593, %v657
      %v690 = vsel %vm626, %v594, %v658
      %v691 = vsel %vm627, %v595, %v659
      %v692 = vsel %vm628, %v596, %v660
      %v693 = vsel %vm629, %v597, %v661
      %v694 = vsel %vm630, %v598, %v662
      %v695 = vsel %vm631, %v599, %v663
      %v696 = vsel %vm632, %v600, %v664
      %v697 = vsel %vm633, %v601, %v665
      %v698 = vsel %vm634, %v602, %v666
      %v699 = vsel %vm635, %v603, %v667
      %v700 = vsel %vm636, %v604, %v668
      %v701 = vsel %vm637, %v605, %v669
      %v702 = vsel %vm638, %v606, %v670
      %v703 = vlaneseq
      %v704 = vshrl.u32 %v703, 7
      %v705 = vadd.s32 %v704, 8
      %vm706 = vcmp.eq.s32.totalorder %v704, 0
      %vm707 = vcmp.eq.s32.totalorder %v705, 0
      %v708 = vrot.slane %v671, 7
      %v709 = vrot.slane %v672, 7
      %v710 = vrot.slane %v673, 7
      %v711 = vrot.slane %v674, 7
      %v712 = vrot.slane %v675, 7
      %v713 = vrot.slane %v676, 7
      %v714 = vrot.slane %v677, 7
      %v715 = vrot.slane %v678, 7
      %v716 = vrot.slane %v679, 7
      %v717 = vrot.slane %v680, 7
      %v718 = vrot.slane %v681, 7
      %v719 = vrot.slane %v682, 7
      %v720 = vrot.slane %v683, 7
      %v721 = vrot.slane %v684, 7
      %v722 = vrot.slane %v685, 7
      %v723 = vrot.slane %v686, 7
      %v724 = vrot.slane %v687, 7
      %v725 = vrot.slane %v688, 7
      %v726 = vrot.slane %v689, 7
      %v727 = vrot.slane %v690, 7
      %v728 = vrot.slane %v691, 7
      %v729 = vrot.slane %v692, 7
      %v730 = vrot.slane %v693, 7
      %v731 = vrot.slane %v694, 7
      %v732 = vrot.slane %v695, 7
      %v733 = vrot.slane %v696, 7
      %v734 = vrot.slane %v697, 7
      %v735 = vrot.slane %v698, 7
      %v736 = vrot.slane %v699, 7
      %v737 = vrot.slane %v700, 7
      %v738 = vrot.slane %v701, 7
      %v739 = vrot.slane %v702, 7
      %vm740 = vcmp.lt.s32.totalorder %v704, 1
      %v741 = vsel %vm740, %v738, %v739
      %v742 = vsel %vm740, %v737, %v738
      %v743 = vsel %vm740, %v736, %v737
      %v744 = vsel %vm740, %v735, %v736
      %v745 = vsel %vm740, %v734, %v735
      %v746 = vsel %vm740, %v733, %v734
      %v747 = vsel %vm740, %v732, %v733
      %v748 = vsel %vm740, %v731, %v732
      %v749 = vsel %vm740, %v730, %v731
      %v750 = vsel %vm740, %v729, %v730
      %v751 = vsel %vm740, %v728, %v729
      %v752 = vsel %vm740, %v727, %v728
      %v753 = vsel %vm740, %v726, %v727
      %v754 = vsel %vm740, %v725, %v726
      %v755 = vsel %vm740, %v724, %v725
      %v756 = vsel %vm740, %v723, %v724
      %v757 = vsel %vm740, %v722, %v723
      %v758 = vsel %vm740, %v721, %v722
      %v759 = vsel %vm740, %v720, %v721
      %v760 = vsel %vm740, %v719, %v720
      %v761 = vsel %vm740, %v718, %v719
      %v762 = vsel %vm740, %v717, %v718
      %v763 = vsel %vm740, %v716, %v717
      %v764 = vsel %vm740, %v715, %v716
      %v765 = vsel %vm740, %v714, %v715
      %v766 = vsel %vm740, %v713, %v714
      %v767 = vsel %vm740, %v712, %v713
      %v768 = vsel %vm740, %v711, %v712
      %v769 = vsel %vm740, %v710, %v711
      %v770 = vsel %vm740, %v709, %v710
      %v771 = vsel %vm740, %v708, %v709
      %v772 = vsel %vm740, %v739, %v708
      %v773 = vsel %vm706, 0.0, %v772
      %v774 = vsel %vm707, 0.0, %v771
      %v775 = vsel %vm706, 0.0, %v770
      %v776 = vsel %vm707, 0.0, %v769
      %v777 = vsel %vm706, 0.0, %v768
      %v778 = vsel %vm707, 0.0, %v767
      %v779 = vsel %vm706, 0.0, %v766
      %v780 = vsel %vm707, 0.0, %v765
      %v781 = vsel %vm706, 0.0, %v764
      %v782 = vsel %vm707, 0.0, %v763
      %v783 = vsel %vm706, 0.0, %v762
      %v784 = vsel %vm707, 0.0, %v761
      %v785 = vsel %vm706, 0.0, %v760
      %v786 = vsel %vm707, 0.0, %v759
      %v787 = vsel %vm706, 0.0, %v758
      %v788 = vsel %vm707, 0.0, %v757
      %v789 = vsel %vm706, 0.0, %v756
      %v790 = vsel %vm707, 0.0, %v755
      %v791 = vsel %vm706, 0.0, %v754
      %v792 = vsel %vm707, 0.0, %v753
      %v793 = vsel %vm706, 0.0, %v752
      %v794 = vsel %vm707, 0.0, %v751
      %v795 = vsel %vm706, 0.0, %v750
      %v796 = vsel %vm707, 0.0, %v749
      %v797 = vsel %vm706, 0.0, %v748
      %v798 = vsel %vm707, 0.0, %v747
      %v799 = vsel %vm706, 0.0, %v746
      %v800 = vsel %vm707, 0.0, %v745
      %v801 = vsel %vm706, 0.0, %v744
      %v802 = vsel %vm707, 0.0, %v743
      %v803 = vsel %vm706, 0.0, %v742
      %v804 = vsel %vm707, 0.0, %v741
      %vm805 = vcmp.eq.s32.totalorder %v704, 15
      %vm806 = vcmp.eq.s32.totalorder %v705, 15
      %v807 = vrot.slane %v671, 1
      %v808 = vrot.slane %v672, 1
      %v809 = vrot.slane %v673, 1
      %v810 = vrot.slane %v674, 1
      %v811 = vrot.slane %v675, 1
      %v812 = vrot.slane %v676, 1
      %v813 = vrot.slane %v677, 1
      %v814 = vrot.slane %v678, 1
      %v815 = vrot.slane %v679, 1
      %v816 = vrot.slane %v680, 1
      %v817 = vrot.slane %v681, 1
      %v818 = vrot.slane %v682, 1
      %v819 = vrot.slane %v683, 1
      %v820 = vrot.slane %v684, 1
      %v821 = vrot.slane %v685, 1
      %v822 = vrot.slane %v686, 1
      %v823 = vrot.slane %v687, 1
      %v824 = vrot.slane %v688, 1
      %v825 = vrot.slane %v689, 1
      %v826 = vrot.slane %v690, 1
      %v827 = vrot.slane %v691, 1
      %v828 = vrot.slane %v692, 1
      %v829 = vrot.slane %v693, 1
      %v830 = vrot.slane %v694, 1
      %v831 = vrot.slane %v695, 1
      %v832 = vrot.slane %v696, 1
      %v833 = vrot.slane %v697, 1
      %v834 = vrot.slane %v698, 1
      %v835 = vrot.slane %v699, 1
      %v836 = vrot.slane %v700, 1
      %v837 = vrot.slane %v701, 1
      %v838 = vrot.slane %v702, 1
      %vm839 = vcmp.lt.s32.totalorder %v704, 7
      %v840 = vsel %vm839, %v837, %v838
      %v841 = vsel %vm839, %v836, %v837
      %v842 = vsel %vm839, %v835, %v836
      %v843 = vsel %vm839, %v834, %v835
      %v844 = vsel %vm839, %v833, %v834
      %v845 = vsel %vm839, %v832, %v833
      %v846 = vsel %vm839, %v831, %v832
      %v847 = vsel %vm839, %v830, %v831
      %v848 = vsel %vm839, %v829, %v830
      %v849 = vsel %vm839, %v828, %v829
      %v850 = vsel %vm839, %v827, %v828
      %v851 = vsel %vm839, %v826, %v827
      %v852 = vsel %vm839, %v825, %v826
      %v853 = vsel %vm839, %v824, %v825
      %v854 = vsel %vm839, %v823, %v824
      %v855 = vsel %vm839, %v822, %v823
      %v856 = vsel %vm839, %v821, %v822
      %v857 = vsel %vm839, %v820, %v821
      %v858 = vsel %vm839, %v819, %v820
      %v859 = vsel %vm839, %v818, %v819
      %v860 = vsel %vm839, %v817, %v818
      %v861 = vsel %vm839, %v816, %v817
      %v862 = vsel %vm839, %v815, %v816
      %v863 = vsel %vm839, %v814, %v815
      %v864 = vsel %vm839, %v813, %v814
      %v865 = vsel %vm839, %v812, %v813
      %v866 = vsel %vm839, %v811, %v812
      %v867 = vsel %vm839, %v810, %v811
      %v868 = vsel %vm839, %v809, %v810
      %v869 = vsel %vm839, %v808, %v809
      %v870 = vsel %vm839, %v807, %v808
      %v871 = vsel %vm839, %v838, %v807
      %v872 = vsel %vm805, 0.0, %v870
      %v873 = vsel %vm806, 0.0, %v869
      %v874 = vsel %vm805, 0.0, %v868
      %v875 = vsel %vm806, 0.0, %v867
      %v876 = vsel %vm805, 0.0, %v866
      %v877 = vsel %vm806, 0.0, %v865
      %v878 = vsel %vm805, 0.0, %v864
      %v879 = vsel %vm806, 0.0, %v863
      %v880 = vsel %vm805, 0.0, %v862
      %v881 = vsel %vm806, 0.0, %v861
      %v882 = vsel %vm805, 0.0, %v860
      %v883 = vsel %vm806, 0.0, %v859
      %v884 = vsel %vm805, 0.0, %v858
      %v885 = vsel %vm806, 0.0, %v857
      %v886 = vsel %vm805, 0.0, %v856
      %v887 = vsel %vm806, 0.0, %v855
      %v888 = vsel %vm805, 0.0, %v854
      %v889 = vsel %vm806, 0.0, %v853
      %v890 = vsel %vm805, 0.0, %v852
      %v891 = vsel %vm806, 0.0, %v851
      %v892 = vsel %vm805, 0.0, %v850
      %v893 = vsel %vm806, 0.0, %v849
      %v894 = vsel %vm805, 0.0, %v848
      %v895 = vsel %vm806, 0.0, %v847
      %v896 = vsel %vm805, 0.0, %v846
      %v897 = vsel %vm806, 0.0, %v845
      %v898 = vsel %vm805, 0.0, %v844
      %v899 = vsel %vm806, 0.0, %v843
      %v900 = vsel %vm805, 0.0, %v842
      %v901 = vsel %vm806, 0.0, %v841
      %v902 = vsel %vm805, 0.0, %v840
      %v903 = vsel %vm806, 0.0, %v871
      %936 = vrot.lane.b32.xlu0 %v671, 4
      %v937 = vpop.permute.xlu0 %936
      %938 = vrot.lane.b32.xlu0 %v672, 4
      %v939 = vpop.permute.xlu0 %938
      %940 = vrot.lane.b32.xlu0 %v673, 4
      %v941 = vpop.permute.xlu0 %940
      %942 = vrot.lane.b32.xlu0 %v674, 4
      %v943 = vpop.permute.xlu0 %942
      %944 = vrot.lane.b32.xlu0 %v675, 4
      %v945 = vpop.permute.xlu0 %944
      %946 = vrot.lane.b32.xlu0 %v676, 4
      %v947 = vpop.permute.xlu0 %946
      %948 = vrot.lane.b32.xlu0 %v677, 4
      %v949 = vpop.permute.xlu0 %948
      %950 = vrot.lane.b32.xlu0 %v678, 4
      %v951 = vpop.permute.xlu0 %950
      %952 = vrot.lane.b32.xlu0 %v679, 4
      %v953 = vpop.permute.xlu0 %952
      %954 = vrot.lane.b32.xlu0 %v680, 4
      %v955 = vpop.permute.xlu0 %954
      %956 = vrot.lane.b32.xlu0 %v681, 4
      %v957 = vpop.permute.xlu0 %956
      %958 = vrot.lane.b32.xlu0 %v682, 4
      %v959 = vpop.permute.xlu0 %958
      %960 = vrot.lane.b32.xlu0 %v683, 4
      %v961 = vpop.permute.xlu0 %960
      %962 = vrot.lane.b32.xlu0 %v684, 4
      %v963 = vpop.permute.xlu0 %962
      %964 = vrot.lane.b32.xlu0 %v685, 4
      %v965 = vpop.permute.xlu0 %964
      %966 = vrot.lane.b32.xlu0 %v686, 4
      %v967 = vpop.permute.xlu0 %966
      %968 = vrot.lane.b32.xlu0 %v687, 4
      %v969 = vpop.permute.xlu0 %968
      %970 = vrot.lane.b32.xlu0 %v688, 4
      %v971 = vpop.permute.xlu0 %970
      %972 = vrot.lane.b32.xlu0 %v689, 4
      %v973 = vpop.permute.xlu0 %972
      %974 = vrot.lane.b32.xlu0 %v690, 4
      %v975 = vpop.permute.xlu0 %974
      %976 = vrot.lane.b32.xlu0 %v691, 4
      %v977 = vpop.permute.xlu0 %976
      %978 = vrot.lane.b32.xlu0 %v692, 4
      %v979 = vpop.permute.xlu0 %978
      %980 = vrot.lane.b32.xlu0 %v693, 4
      %v981 = vpop.permute.xlu0 %980
      %982 = vrot.lane.b32.xlu0 %v694, 4
      %v983 = vpop.permute.xlu0 %982
      %984 = vrot.lane.b32.xlu0 %v695, 4
      %v985 = vpop.permute.xlu0 %984
      %986 = vrot.lane.b32.xlu0 %v696, 4
      %v987 = vpop.permute.xlu0 %986
      %988 = vrot.lane.b32.xlu0 %v697, 4
      %v989 = vpop.permute.xlu0 %988
      %990 = vrot.lane.b32.xlu0 %v698, 4
      %v991 = vpop.permute.xlu0 %990
      %992 = vrot.lane.b32.xlu0 %v699, 4
      %v993 = vpop.permute.xlu0 %992
      %994 = vrot.lane.b32.xlu0 %v700, 4
      %v995 = vpop.permute.xlu0 %994
      %996 = vrot.lane.b32.xlu0 %v701, 4
      %v997 = vpop.permute.xlu0 %996
      %998 = vrot.lane.b32.xlu0 %v702, 4
      %v999 = vpop.permute.xlu0 %998
      %1064 = vrot.lane.b32.xlu0 %v872, 8
      %v1065 = vpop.permute.xlu0 %1064
      %1066 = vrot.lane.b32.xlu0 %v873, 8
      %v1067 = vpop.permute.xlu0 %1066
      %1068 = vrot.lane.b32.xlu0 %v874, 8
      %v1069 = vpop.permute.xlu0 %1068
      %1070 = vrot.lane.b32.xlu0 %v875, 8
      %v1071 = vpop.permute.xlu0 %1070
      %1072 = vrot.lane.b32.xlu0 %v876, 8
      %v1073 = vpop.permute.xlu0 %1072
      %1074 = vrot.lane.b32.xlu0 %v877, 8
      %v1075 = vpop.permute.xlu0 %1074
      %1076 = vrot.lane.b32.xlu0 %v878, 8
      %v1077 = vpop.permute.xlu0 %1076
      %1078 = vrot.lane.b32.xlu0 %v879, 8
      %v1079 = vpop.permute.xlu0 %1078
      %1080 = vrot.lane.b32.xlu0 %v880, 8
      %v1081 = vpop.permute.xlu0 %1080
      %1082 = vrot.lane.b32.xlu0 %v881, 8
      %v1083 = vpop.permute.xlu0 %1082
      %1084 = vrot.lane.b32.xlu0 %v882, 8
      %v1085 = vpop.permute.xlu0 %1084
      %1086 = vrot.lane.b32.xlu0 %v883, 8
      %v1087 = vpop.permute.xlu0 %1086
      %1088 = vrot.lane.b32.xlu0 %v884, 8
      %v1089 = vpop.permute.xlu0 %1088
      %1090 = vrot.lane.b32.xlu0 %v885, 8
      %v1091 = vpop.permute.xlu0 %1090
      %1092 = vrot.lane.b32.xlu0 %v886, 8
      %v1093 = vpop.permute.xlu0 %1092
      %1094 = vrot.lane.b32.xlu0 %v887, 8
      %v1095 = vpop.permute.xlu0 %1094
      %1096 = vrot.lane.b32.xlu0 %v888, 8
      %v1097 = vpop.permute.xlu0 %1096
      %1098 = vrot.lane.b32.xlu0 %v889, 8
      %v1099 = vpop.permute.xlu0 %1098
      %1100 = vrot.lane.b32.xlu0 %v890, 8
      %v1101 = vpop.permute.xlu0 %1100
      %1102 = vrot.lane.b32.xlu0 %v891, 8
      %v1103 = vpop.permute.xlu0 %1102
      %1104 = vrot.lane.b32.xlu0 %v892, 8
      %v1105 = vpop.permute.xlu0 %1104
      %1106 = vrot.lane.b32.xlu0 %v893, 8
      %v1107 = vpop.permute.xlu0 %1106
      %1108 = vrot.lane.b32.xlu0 %v894, 8
      %v1109 = vpop.permute.xlu0 %1108
      %1110 = vrot.lane.b32.xlu0 %v895, 8
      %v1111 = vpop.permute.xlu0 %1110
      %1112 = vrot.lane.b32.xlu0 %v896, 8
      %v1113 = vpop.permute.xlu0 %1112
      %1114 = vrot.lane.b32.xlu0 %v897, 8
      %v1115 = vpop.permute.xlu0 %1114
      %1116 = vrot.lane.b32.xlu0 %v898, 8
      %v1117 = vpop.permute.xlu0 %1116
      %1118 = vrot.lane.b32.xlu0 %v899, 8
      %v1119 = vpop.permute.xlu0 %1118
      %1120 = vrot.lane.b32.xlu0 %v900, 8
      %v1121 = vpop.permute.xlu0 %1120
      %1122 = vrot.lane.b32.xlu0 %v901, 8
      %v1123 = vpop.permute.xlu0 %1122
      %1124 = vrot.lane.b32.xlu0 %v902, 8
      %v1125 = vpop.permute.xlu0 %1124
      %1126 = vrot.lane.b32.xlu0 %v903, 8
      %v1127 = vpop.permute.xlu0 %1126
      %vm1160 = vcmask 31744
      %v1161 = vsel %vm1160, %v773, %v937
      %v1162 = vsel %vm1160, %v774, %v939
      %v1163 = vsel %vm1160, %v775, %v941
      %v1164 = vsel %vm1160, %v776, %v943
      %v1165 = vsel %vm1160, %v777, %v945
      %v1166 = vsel %vm1160, %v778, %v947
      %v1167 = vsel %vm1160, %v779, %v949
      %v1168 = vsel %vm1160, %v780, %v951
      %v1169 = vsel %vm1160, %v781, %v953
      %v1170 = vsel %vm1160, %v782, %v955
      %v1171 = vsel %vm1160, %v783, %v957
      %v1172 = vsel %vm1160, %v784, %v959
      %v1173 = vsel %vm1160, %v785, %v961
      %v1174 = vsel %vm1160, %v786, %v963
      %v1175 = vsel %vm1160, %v787, %v965
      %v1176 = vsel %vm1160, %v788, %v967
      %v1177 = vsel %vm1160, %v789, %v969
      %v1178 = vsel %vm1160, %v790, %v971
      %v1179 = vsel %vm1160, %v791, %v973
      %v1180 = vsel %vm1160, %v792, %v975
      %v1181 = vsel %vm1160, %v793, %v977
      %v1182 = vsel %vm1160, %v794, %v979
      %v1183 = vsel %vm1160, %v795, %v981
      %v1184 = vsel %vm1160, %v796, %v983
      %v1185 = vsel %vm1160, %v797, %v985
      %v1186 = vsel %vm1160, %v798, %v987
      %v1187 = vsel %vm1160, %v799, %v989
      %v1188 = vsel %vm1160, %v800, %v991
      %v1189 = vsel %vm1160, %v801, %v993
      %v1190 = vsel %vm1160, %v802, %v995
      %v1191 = vsel %vm1160, %v803, %v997
      %v1192 = vsel %vm1160, %v804, %v999
      %v1193 = vsel %vm393, %v1161, %v1065
      %v1194 = vsel %vm393, %v1162, %v1067
      %v1195 = vsel %vm393, %v1163, %v1069
      %v1196 = vsel %vm393, %v1164, %v1071
      %v1197 = vsel %vm393, %v1165, %v1073
      %v1198 = vsel %vm393, %v1166, %v1075
      %v1199 = vsel %vm393, %v1167, %v1077
      %v1200 = vsel %vm393, %v1168, %v1079
      %v1201 = vsel %vm393, %v1169, %v1081
      %v1202 = vsel %vm393, %v1170, %v1083
      %v1203 = vsel %vm393, %v1171, %v1085
      %v1204 = vsel %vm393, %v1172, %v1087
      %v1205 = vsel %vm393, %v1173, %v1089
      %v1206 = vsel %vm393, %v1174, %v1091
      %v1207 = vsel %vm393, %v1175, %v1093
      %v1208 = vsel %vm393, %v1176, %v1095
      %v1209 = vsel %vm393, %v1177, %v1097
      %v1210 = vsel %vm393, %v1178, %v1099
      %v1211 = vsel %vm393, %v1179, %v1101
      %v1212 = vsel %vm393, %v1180, %v1103
      %v1213 = vsel %vm393, %v1181, %v1105
      %v1214 = vsel %vm393, %v1182, %v1107
      %v1215 = vsel %vm393, %v1183, %v1109
      %v1216 = vsel %vm393, %v1184, %v1111
      %v1217 = vsel %vm393, %v1185, %v1113
      %v1218 = vsel %vm393, %v1186, %v1115
      %v1219 = vsel %vm393, %v1187, %v1117
      %v1220 = vsel %vm393, %v1188, %v1119
      %v1221 = vsel %vm393, %v1189, %v1121
      %v1222 = vsel %vm393, %v1190, %v1123
      %v1223 = vsel %vm393, %v1191, %v1125
      %v1224 = vsel %vm393, %v1192, %v1127
      %v1225 = vadd.s32 %v704, 16
      %v1226 = vadd.s32 %v704, 24
      %v1227 = vadd.s32 %v704, 32
      %v1228 = vadd.s32 %v704, 40
      %v1229 = vadd.s32 %v704, 48
      %v1230 = vadd.s32 %v704, 56
      %v1231 = vadd.s32 %v704, 64
      %v1232 = vadd.s32 %v704, 72
      %v1233 = vadd.s32 %v704, 80
      %v1234 = vadd.s32 %v704, 88
      %v1235 = vadd.s32 %v704, 96
      %v1236 = vadd.s32 %v704, 104
      %v1237 = vadd.s32 %v704, 112
      %v1238 = vadd.s32 %v704, 120
      %v1239 = vadd.s32 %v704, 128
      %v1240 = vadd.s32 %v704, 136
      %v1241 = vadd.s32 %v704, 144
      %v1242 = vadd.s32 %v704, 152
      %v1243 = vadd.s32 %v704, 160
      %v1244 = vadd.s32 %v704, 168
      %v1245 = vadd.s32 %v704, 176
      %v1246 = vadd.s32 %v704, 184
      %v1247 = vadd.s32 %v704, 192
      %v1248 = vadd.s32 %v704, 200
      %v1249 = vadd.s32 %v704, 208
      %v1250 = vadd.s32 %v704, 216
      %v1251 = vadd.s32 %v704, 224
      %v1252 = vadd.s32 %v704, 232
      %v1253 = vadd.s32 %v704, 240
      %v1254 = vadd.s32 %v704, 248
      %vm1255 = vcmp.lt.s32.totalorder %v704, 16
      %vm1256 = vcmp.lt.s32.totalorder %v705, 16
      %vm1257 = vcmp.lt.s32.totalorder %v1225, 16
      %vm1258 = vcmp.lt.s32.totalorder %v1226, 16
      %vm1259 = vcmp.lt.s32.totalorder %v1227, 16
      %vm1260 = vcmp.lt.s32.totalorder %v1228, 16
      %vm1261 = vcmp.lt.s32.totalorder %v1229, 16
      %vm1262 = vcmp.lt.s32.totalorder %v1230, 16
      %vm1263 = vcmp.lt.s32.totalorder %v1231, 16
      %vm1264 = vcmp.lt.s32.totalorder %v1232, 16
      %vm1265 = vcmp.lt.s32.totalorder %v1233, 16
      %vm1266 = vcmp.lt.s32.totalorder %v1234, 16
      %vm1267 = vcmp.lt.s32.totalorder %v1235, 16
      %vm1268 = vcmp.lt.s32.totalorder %v1236, 16
      %vm1269 = vcmp.lt.s32.totalorder %v1237, 16
      %vm1270 = vcmp.lt.s32.totalorder %v1238, 16
      %vm1271 = vcmp.lt.s32.totalorder %v1239, 16
      %vm1272 = vcmp.lt.s32.totalorder %v1240, 16
      %vm1273 = vcmp.lt.s32.totalorder %v1241, 16
      %vm1274 = vcmp.lt.s32.totalorder %v1242, 16
      %vm1275 = vcmp.lt.s32.totalorder %v1243, 16
      %vm1276 = vcmp.lt.s32.totalorder %v1244, 16
      %vm1277 = vcmp.lt.s32.totalorder %v1245, 16
      %vm1278 = vcmp.lt.s32.totalorder %v1246, 16
      %vm1279 = vcmp.lt.s32.totalorder %v1247, 16
      %vm1280 = vcmp.lt.s32.totalorder %v1248, 16
      %vm1281 = vcmp.lt.s32.totalorder %v1249, 16
      %vm1282 = vcmp.lt.s32.totalorder %v1250, 16
      %vm1283 = vcmp.lt.s32.totalorder %v1251, 16
      %vm1284 = vcmp.lt.s32.totalorder %v1252, 16
      %vm1285 = vcmp.lt.s32.totalorder %v1253, 16
      %vm1286 = vcmp.lt.s32.totalorder %v1254, 16
      %v1287 = vsel %vm1255, 0.0, %v1223
      %v1288 = vsel %vm1256, 0.0, %v1224
      %v1289 = vsel %vm1257, 0.0, %v1193
      %v1290 = vsel %vm1258, 0.0, %v1194
      %v1291 = vsel %vm1259, 0.0, %v1195
      %v1292 = vsel %vm1260, 0.0, %v1196
      %v1293 = vsel %vm1261, 0.0, %v1197
      %v1294 = vsel %vm1262, 0.0, %v1198
      %v1295 = vsel %vm1263, 0.0, %v1199
      %v1296 = vsel %vm1264, 0.0, %v1200
      %v1297 = vsel %vm1265, 0.0, %v1201
      %v1298 = vsel %vm1266, 0.0, %v1202
      %v1299 = vsel %vm1267, 0.0, %v1203
      %v1300 = vsel %vm1268, 0.0, %v1204
      %v1301 = vsel %vm1269, 0.0, %v1205
      %v1302 = vsel %vm1270, 0.0, %v1206
      %v1303 = vsel %vm1271, 0.0, %v1207
      %v1304 = vsel %vm1272, 0.0, %v1208
      %v1305 = vsel %vm1273, 0.0, %v1209
      %v1306 = vsel %vm1274, 0.0, %v1210
      %v1307 = vsel %vm1275, 0.0, %v1211
      %v1308 = vsel %vm1276, 0.0, %v1212
      %v1309 = vsel %vm1277, 0.0, %v1213
      %v1310 = vsel %vm1278, 0.0, %v1214
      %v1311 = vsel %vm1279, 0.0, %v1215
      %v1312 = vsel %vm1280, 0.0, %v1216
      %v1313 = vsel %vm1281, 0.0, %v1217
      %v1314 = vsel %vm1282, 0.0, %v1218
      %v1315 = vsel %vm1283, 0.0, %v1219
      %v1316 = vsel %vm1284, 0.0, %v1220
      %v1317 = vsel %vm1285, 0.0, %v1221
      %v1318 = vsel %vm1286, 0.0, %v1222
      %vm1319 = vcmp.ge.s32.totalorder %v704, 240
      %vm1320 = vcmp.ge.s32.totalorder %v705, 240
      %vm1321 = vcmp.ge.s32.totalorder %v1225, 240
      %vm1322 = vcmp.ge.s32.totalorder %v1226, 240
      %vm1323 = vcmp.ge.s32.totalorder %v1227, 240
      %vm1324 = vcmp.ge.s32.totalorder %v1228, 240
      %vm1325 = vcmp.ge.s32.totalorder %v1229, 240
      %vm1326 = vcmp.ge.s32.totalorder %v1230, 240
      %vm1327 = vcmp.ge.s32.totalorder %v1231, 240
      %vm1328 = vcmp.ge.s32.totalorder %v1232, 240
      %vm1329 = vcmp.ge.s32.totalorder %v1233, 240
      %vm1330 = vcmp.ge.s32.totalorder %v1234, 240
      %vm1331 = vcmp.ge.s32.totalorder %v1235, 240
      %vm1332 = vcmp.ge.s32.totalorder %v1236, 240
      %vm1333 = vcmp.ge.s32.totalorder %v1237, 240
      %vm1334 = vcmp.ge.s32.totalorder %v1238, 240
      %vm1335 = vcmp.ge.s32.totalorder %v1239, 240
      %vm1336 = vcmp.ge.s32.totalorder %v1240, 240
      %vm1337 = vcmp.ge.s32.totalorder %v1241, 240
      %vm1338 = vcmp.ge.s32.totalorder %v1242, 240
      %vm1339 = vcmp.ge.s32.totalorder %v1243, 240
      %vm1340 = vcmp.ge.s32.totalorder %v1244, 240
      %vm1341 = vcmp.ge.s32.totalorder %v1245, 240
      %vm1342 = vcmp.ge.s32.totalorder %v1246, 240
      %vm1343 = vcmp.ge.s32.totalorder %v1247, 240
      %vm1344 = vcmp.ge.s32.totalorder %v1248, 240
      %vm1345 = vcmp.ge.s32.totalorder %v1249, 240
      %vm1346 = vcmp.ge.s32.totalorder %v1250, 240
      %vm1347 = vcmp.ge.s32.totalorder %v1251, 240
      %vm1348 = vcmp.ge.s32.totalorder %v1252, 240
      %vm1349 = vcmp.ge.s32.totalorder %v1253, 240
      %vm1350 = vcmp.ge.s32.totalorder %v1254, 240
      %v1351 = vsel %vm1319, 0.0, %v1195
      %v1352 = vsel %vm1320, 0.0, %v1196
      %v1353 = vsel %vm1321, 0.0, %v1197
      %v1354 = vsel %vm1322, 0.0, %v1198
      %v1355 = vsel %vm1323, 0.0, %v1199
      %v1356 = vsel %vm1324, 0.0, %v1200
      %v1357 = vsel %vm1325, 0.0, %v1201
      %v1358 = vsel %vm1326, 0.0, %v1202
      %v1359 = vsel %vm1327, 0.0, %v1203
      %v1360 = vsel %vm1328, 0.0, %v1204
      %v1361 = vsel %vm1329, 0.0, %v1205
      %v1362 = vsel %vm1330, 0.0, %v1206
      %v1363 = vsel %vm1331, 0.0, %v1207
      %v1364 = vsel %vm1332, 0.0, %v1208
      %v1365 = vsel %vm1333, 0.0, %v1209
      %v1366 = vsel %vm1334, 0.0, %v1210
      %v1367 = vsel %vm1335, 0.0, %v1211
      %v1368 = vsel %vm1336, 0.0, %v1212
      %v1369 = vsel %vm1337, 0.0, %v1213
      %v1370 = vsel %vm1338, 0.0, %v1214
      %v1371 = vsel %vm1339, 0.0, %v1215
      %v1372 = vsel %vm1340, 0.0, %v1216
      %v1373 = vsel %vm1341, 0.0, %v1217
      %v1374 = vsel %vm1342, 0.0, %v1218
      %v1375 = vsel %vm1343, 0.0, %v1219
      %v1376 = vsel %vm1344, 0.0, %v1220
      %v1377 = vsel %vm1345, 0.0, %v1221
      %v1378 = vsel %vm1346, 0.0, %v1222
      %v1379 = vsel %vm1347, 0.0, %v1223
      %v1380 = vsel %vm1348, 0.0, %v1224
      %v1381 = vsel %vm1349, 0.0, %v1193
      %v1382 = vsel %vm1350, 0.0, %v1194
      %1415 = vrot.lane.b32.xlu0 %v1193, 12
      %v1416 = vpop.permute.xlu0 %1415
      %1417 = vrot.lane.b32.xlu0 %v1194, 12
      %v1418 = vpop.permute.xlu0 %1417
      %1419 = vrot.lane.b32.xlu0 %v1195, 12
      %v1420 = vpop.permute.xlu0 %1419
      %1421 = vrot.lane.b32.xlu0 %v1196, 12
      %v1422 = vpop.permute.xlu0 %1421
      %1423 = vrot.lane.b32.xlu0 %v1197, 12
      %v1424 = vpop.permute.xlu0 %1423
      %1425 = vrot.lane.b32.xlu0 %v1198, 12
      %v1426 = vpop.permute.xlu0 %1425
      %1427 = vrot.lane.b32.xlu0 %v1199, 12
      %v1428 = vpop.permute.xlu0 %1427
      %1429 = vrot.lane.b32.xlu0 %v1200, 12
      %v1430 = vpop.permute.xlu0 %1429
      %1431 = vrot.lane.b32.xlu0 %v1201, 12
      %v1432 = vpop.permute.xlu0 %1431
      %1433 = vrot.lane.b32.xlu0 %v1202, 12
      %v1434 = vpop.permute.xlu0 %1433
      %1435 = vrot.lane.b32.xlu0 %v1203, 12
      %v1436 = vpop.permute.xlu0 %1435
      %1437 = vrot.lane.b32.xlu0 %v1204, 12
      %v1438 = vpop.permute.xlu0 %1437
      %1439 = vrot.lane.b32.xlu0 %v1205, 12
      %v1440 = vpop.permute.xlu0 %1439
      %1441 = vrot.lane.b32.xlu0 %v1206, 12
      %v1442 = vpop.permute.xlu0 %1441
      %1443 = vrot.lane.b32.xlu0 %v1207, 12
      %v1444 = vpop.permute.xlu0 %1443
      %1445 = vrot.lane.b32.xlu0 %v1208, 12
      %v1446 = vpop.permute.xlu0 %1445
      %1447 = vrot.lane.b32.xlu0 %v1209, 12
      %v1448 = vpop.permute.xlu0 %1447
      %1449 = vrot.lane.b32.xlu0 %v1210, 12
      %v1450 = vpop.permute.xlu0 %1449
      %1451 = vrot.lane.b32.xlu0 %v1211, 12
      %v1452 = vpop.permute.xlu0 %1451
      %1453 = vrot.lane.b32.xlu0 %v1212, 12
      %v1454 = vpop.permute.xlu0 %1453
      %1455 = vrot.lane.b32.xlu0 %v1213, 12
      %v1456 = vpop.permute.xlu0 %1455
      %1457 = vrot.lane.b32.xlu0 %v1214, 12
      %v1458 = vpop.permute.xlu0 %1457
      %1459 = vrot.lane.b32.xlu0 %v1215, 12
      %v1460 = vpop.permute.xlu0 %1459
      %1461 = vrot.lane.b32.xlu0 %v1216, 12
      %v1462 = vpop.permute.xlu0 %1461
      %1463 = vrot.lane.b32.xlu0 %v1217, 12
      %v1464 = vpop.permute.xlu0 %1463
      %1465 = vrot.lane.b32.xlu0 %v1218, 12
      %v1466 = vpop.permute.xlu0 %1465
      %1467 = vrot.lane.b32.xlu0 %v1219, 12
      %v1468 = vpop.permute.xlu0 %1467
      %1469 = vrot.lane.b32.xlu0 %v1220, 12
      %v1470 = vpop.permute.xlu0 %1469
      %1471 = vrot.lane.b32.xlu0 %v1221, 12
      %v1472 = vpop.permute.xlu0 %1471
      %1473 = vrot.lane.b32.xlu0 %v1222, 12
      %v1474 = vpop.permute.xlu0 %1473
      %1475 = vrot.lane.b32.xlu0 %v1223, 12
      %v1476 = vpop.permute.xlu0 %1475
      %1477 = vrot.lane.b32.xlu0 %v1224, 12
      %v1478 = vpop.permute.xlu0 %1477
      %1543 = vrot.lane.b32.xlu0 %v1351, 24
      %v1544 = vpop.permute.xlu0 %1543
      %1545 = vrot.lane.b32.xlu0 %v1352, 24
      %v1546 = vpop.permute.xlu0 %1545
      %1547 = vrot.lane.b32.xlu0 %v1353, 24
      %v1548 = vpop.permute.xlu0 %1547
      %1549 = vrot.lane.b32.xlu0 %v1354, 24
      %v1550 = vpop.permute.xlu0 %1549
      %1551 = vrot.lane.b32.xlu0 %v1355, 24
      %v1552 = vpop.permute.xlu0 %1551
      %1553 = vrot.lane.b32.xlu0 %v1356, 24
      %v1554 = vpop.permute.xlu0 %1553
      %1555 = vrot.lane.b32.xlu0 %v1357, 24
      %v1556 = vpop.permute.xlu0 %1555
      %1557 = vrot.lane.b32.xlu0 %v1358, 24
      %v1558 = vpop.permute.xlu0 %1557
      %1559 = vrot.lane.b32.xlu0 %v1359, 24
      %v1560 = vpop.permute.xlu0 %1559
      %1561 = vrot.lane.b32.xlu0 %v1360, 24
      %v1562 = vpop.permute.xlu0 %1561
      %1563 = vrot.lane.b32.xlu0 %v1361, 24
      %v1564 = vpop.permute.xlu0 %1563
      %1565 = vrot.lane.b32.xlu0 %v1362, 24
      %v1566 = vpop.permute.xlu0 %1565
      %1567 = vrot.lane.b32.xlu0 %v1363, 24
      %v1568 = vpop.permute.xlu0 %1567
      %1569 = vrot.lane.b32.xlu0 %v1364, 24
      %v1570 = vpop.permute.xlu0 %1569
      %1571 = vrot.lane.b32.xlu0 %v1365, 24
      %v1572 = vpop.permute.xlu0 %1571
      %1573 = vrot.lane.b32.xlu0 %v1366, 24
      %v1574 = vpop.permute.xlu0 %1573
      %1575 = vrot.lane.b32.xlu0 %v1367, 24
      %v1576 = vpop.permute.xlu0 %1575
      %1577 = vrot.lane.b32.xlu0 %v1368, 24
      %v1578 = vpop.permute.xlu0 %1577
      %1579 = vrot.lane.b32.xlu0 %v1369, 24
      %v1580 = vpop.permute.xlu0 %1579
      %1581 = vrot.lane.b32.xlu0 %v1370, 24
      %v1582 = vpop.permute.xlu0 %1581
      %1583 = vrot.lane.b32.xlu0 %v1371, 24
      %v1584 = vpop.permute.xlu0 %1583
      %1585 = vrot.lane.b32.xlu0 %v1372, 24
      %v1586 = vpop.permute.xlu0 %1585
      %1587 = vrot.lane.b32.xlu0 %v1373, 24
      %v1588 = vpop.permute.xlu0 %1587
      %1589 = vrot.lane.b32.xlu0 %v1374, 24
      %v1590 = vpop.permute.xlu0 %1589
      %1591 = vrot.lane.b32.xlu0 %v1375, 24
      %v1592 = vpop.permute.xlu0 %1591
      %1593 = vrot.lane.b32.xlu0 %v1376, 24
      %v1594 = vpop.permute.xlu0 %1593
      %1595 = vrot.lane.b32.xlu0 %v1377, 24
      %v1596 = vpop.permute.xlu0 %1595
      %1597 = vrot.lane.b32.xlu0 %v1378, 24
      %v1598 = vpop.permute.xlu0 %1597
      %1599 = vrot.lane.b32.xlu0 %v1379, 24
      %v1600 = vpop.permute.xlu0 %1599
      %1601 = vrot.lane.b32.xlu0 %v1380, 24
      %v1602 = vpop.permute.xlu0 %1601
      %1603 = vrot.lane.b32.xlu0 %v1381, 24
      %v1604 = vpop.permute.xlu0 %1603
      %1605 = vrot.lane.b32.xlu0 %v1382, 24
      %v1606 = vpop.permute.xlu0 %1605
      %vm1639 = vcmask 97280
      %v1640 = vsel %vm1639, %v1287, %v1416
      %v1641 = vsel %vm1639, %v1288, %v1418
      %v1642 = vsel %vm1639, %v1289, %v1420
      %v1643 = vsel %vm1639, %v1290, %v1422
      %v1644 = vsel %vm1639, %v1291, %v1424
      %v1645 = vsel %vm1639, %v1292, %v1426
      %v1646 = vsel %vm1639, %v1293, %v1428
      %v1647 = vsel %vm1639, %v1294, %v1430
      %v1648 = vsel %vm1639, %v1295, %v1432
      %v1649 = vsel %vm1639, %v1296, %v1434
      %v1650 = vsel %vm1639, %v1297, %v1436
      %v1651 = vsel %vm1639, %v1298, %v1438
      %v1652 = vsel %vm1639, %v1299, %v1440
      %v1653 = vsel %vm1639, %v1300, %v1442
      %v1654 = vsel %vm1639, %v1301, %v1444
      %v1655 = vsel %vm1639, %v1302, %v1446
      %v1656 = vsel %vm1639, %v1303, %v1448
      %v1657 = vsel %vm1639, %v1304, %v1450
      %v1658 = vsel %vm1639, %v1305, %v1452
      %v1659 = vsel %vm1639, %v1306, %v1454
      %v1660 = vsel %vm1639, %v1307, %v1456
      %v1661 = vsel %vm1639, %v1308, %v1458
      %v1662 = vsel %vm1639, %v1309, %v1460
      %v1663 = vsel %vm1639, %v1310, %v1462
      %v1664 = vsel %vm1639, %v1311, %v1464
      %v1665 = vsel %vm1639, %v1312, %v1466
      %v1666 = vsel %vm1639, %v1313, %v1468
      %v1667 = vsel %vm1639, %v1314, %v1470
      %v1668 = vsel %vm1639, %v1315, %v1472
      %v1669 = vsel %vm1639, %v1316, %v1474
      %v1670 = vsel %vm1639, %v1317, %v1476
      %v1671 = vsel %vm1639, %v1318, %v1478
      %vm1672 = vcmask 195584
      %v1673 = vsel %vm1672, %v1640, %v1544
      %v1674 = vsel %vm1672, %v1641, %v1546
      %v1675 = vsel %vm1672, %v1642, %v1548
      %v1676 = vsel %vm1672, %v1643, %v1550
      %v1677 = vsel %vm1672, %v1644, %v1552
      %v1678 = vsel %vm1672, %v1645, %v1554
      %v1679 = vsel %vm1672, %v1646, %v1556
      %v1680 = vsel %vm1672, %v1647, %v1558
      %v1681 = vsel %vm1672, %v1648, %v1560
      %v1682 = vsel %vm1672, %v1649, %v1562
      %v1683 = vsel %vm1672, %v1650, %v1564
      %v1684 = vsel %vm1672, %v1651, %v1566
      %v1685 = vsel %vm1672, %v1652, %v1568
      %v1686 = vsel %vm1672, %v1653, %v1570
      %v1687 = vsel %vm1672, %v1654, %v1572
      %v1688 = vsel %vm1672, %v1655, %v1574
      %v1689 = vsel %vm1672, %v1656, %v1576
      %v1690 = vsel %vm1672, %v1657, %v1578
      %v1691 = vsel %vm1672, %v1658, %v1580
      %v1692 = vsel %vm1672, %v1659, %v1582
      %v1693 = vsel %vm1672, %v1660, %v1584
      %v1694 = vsel %vm1672, %v1661, %v1586
      %v1695 = vsel %vm1672, %v1662, %v1588
      %v1696 = vsel %vm1672, %v1663, %v1590
      %v1697 = vsel %vm1672, %v1664, %v1592
      %v1698 = vsel %vm1672, %v1665, %v1594
      %v1699 = vsel %vm1672, %v1666, %v1596
      %v1700 = vsel %vm1672, %v1667, %v1598
      %v1701 = vsel %vm1672, %v1668, %v1600
      %v1702 = vsel %vm1672, %v1669, %v1602
      %v1703 = vsel %vm1672, %v1670, %v1604
      %v1704 = vsel %vm1672, %v1671, %v1606
      %v1705 = vpack.c.bf16 %v1674, %v1673
      %v1706 = vpack.c.bf16 %v1676, %v1675
      %v1707 = vpack.c.bf16 %v1678, %v1677
      %v1708 = vpack.c.bf16 %v1680, %v1679
      %v1709 = vpack.c.bf16 %v1682, %v1681
      %v1710 = vpack.c.bf16 %v1684, %v1683
      %v1711 = vpack.c.bf16 %v1686, %v1685
      %v1712 = vpack.c.bf16 %v1688, %v1687
      %v1713 = vpack.c.bf16 %v1690, %v1689
      %v1714 = vpack.c.bf16 %v1692, %v1691
      %v1715 = vpack.c.bf16 %v1694, %v1693
      %v1716 = vpack.c.bf16 %v1696, %v1695
      %v1717 = vpack.c.bf16 %v1698, %v1697
      %v1718 = vpack.c.bf16 %v1700, %v1699
      %v1719 = vpack.c.bf16 %v1702, %v1701
      %v1720 = vpack.c.bf16 %v1704, %v1703
      %v1721 = vld [vmem:[%s4] sm:$0xf]
      %v1722 = vld [vmem:[%s4 + $0x4] sm:$0xf]
      %v1723 = vld [vmem:[%s4 + $0x8] sm:$0xf]
      %v1724 = vld [vmem:[%s4 + $0xc] sm:$0xf]
      %v1725 = vld [vmem:[%s4 + $0x10] sm:$0x3]
      %v1731 = vunpack.c.l.b16 %v1721
      %v1732 = vunpack.c.l.b16 %v1722
      %v1733 = vunpack.c.l.b16 %v1723
      %v1734 = vunpack.c.l.b16 %v1724
      %v1735 = vunpack.c.l.b16 %v1725
      %v1736 = vpack.c.b16 %v1732, %v1731
      %v1737 = vpack.c.b16 %v1734, %v1733
      %v1738 = vpack.c.b16 %v1735, %v1735
      %vm1741 = vcmask 293888
      %v1743 = vsel %vm1741, %v1705, 0
      %v1746 = vsel %vm1741, %v1706, 0
      %v1749 = vsel %vm1741, %v1707, 0
      %v1752 = vsel %vm1741, %v1708, 0
      %v1755 = vsel %vm1741, %v1709, 0
      %v1758 = vsel %vm1741, %v1710, 0
      %v1761 = vsel %vm1741, %v1711, 0
      %v1764 = vsel %vm1741, %v1712, 0
      %v1767 = vsel %vm1741, %v1713, 0
      %v1770 = vsel %vm1741, %v1714, 0
      %v1773 = vsel %vm1741, %v1715, 0
      %v1776 = vsel %vm1741, %v1716, 0
      %v1779 = vsel %vm1741, %v1717, 0
      %v1782 = vsel %vm1741, %v1718, 0
      %v1785 = vsel %vm1741, %v1719, 0
      %v1788 = vsel %vm1741, %v1720, 0
      %vm1790 = vcmask 1041408
      %v1792 = vsel %vm1790, %v1738, 0
      %1794 = vmatpush.bf16.msra.mxu0 0
      %1795 = vmatpush.bf16.msra.mxu0 0
      %1796 = vmatpush.bf16.msra.mxu0 0
      %1797 = vmatpush.bf16.msra.mxu0 0
      %1798 = vmatpush.bf16.msra.mxu0 0
      %1799 = vmatpush.bf16.msra.mxu0 %v1792
      %1800 = vmatpush.bf16.msra.mxu0 %v1737
      %1801 = vmatpush.bf16.msra.mxu0 %v1736
      %1802 = vmatmul.bf16.gmra.mxu0 %v1743
      %v1803 = vpop.f32.mrf.mxu0
      %v1804 = vadd.f32 0.0, %v1803
      %v1805 = vpop.f32.mrf.mxu0
      %v1806 = vadd.f32 0.0, %v1805
      %1807 = vmatmul.bf16.gmra.mxu0 %v1746
      %v1808 = vpop.f32.mrf.mxu0
      %v1809 = vadd.f32 0.0, %v1808
      %v1810 = vpop.f32.mrf.mxu0
      %v1811 = vadd.f32 0.0, %v1810
      %1812 = vmatmul.bf16.gmra.mxu0 %v1749
      %v1813 = vpop.f32.mrf.mxu0
      %v1814 = vadd.f32 0.0, %v1813
      %v1815 = vpop.f32.mrf.mxu0
      %v1816 = vadd.f32 0.0, %v1815
      %1817 = vmatmul.bf16.gmra.mxu0 %v1752
      %v1818 = vpop.f32.mrf.mxu0
      %v1819 = vadd.f32 0.0, %v1818
      %v1820 = vpop.f32.mrf.mxu0
      %v1821 = vadd.f32 0.0, %v1820
      %1822 = vmatmul.bf16.gmra.mxu0 %v1755
      %v1823 = vpop.f32.mrf.mxu0
      %v1824 = vadd.f32 0.0, %v1823
      %v1825 = vpop.f32.mrf.mxu0
      %v1826 = vadd.f32 0.0, %v1825
      %1827 = vmatmul.bf16.gmra.mxu0 %v1758
      %v1828 = vpop.f32.mrf.mxu0
      %v1829 = vadd.f32 0.0, %v1828
      %v1830 = vpop.f32.mrf.mxu0
      %v1831 = vadd.f32 0.0, %v1830
      %1832 = vmatmul.bf16.gmra.mxu0 %v1761
      %v1833 = vpop.f32.mrf.mxu0
      %v1834 = vadd.f32 0.0, %v1833
      %v1835 = vpop.f32.mrf.mxu0
      %v1836 = vadd.f32 0.0, %v1835
      %1837 = vmatmul.bf16.gmra.mxu0 %v1764
      %v1838 = vpop.f32.mrf.mxu0
      %v1839 = vadd.f32 0.0, %v1838
      %v1840 = vpop.f32.mrf.mxu0
      %v1841 = vadd.f32 0.0, %v1840
      %1842 = vmatmul.bf16.gmra.mxu0 %v1767
      %v1843 = vpop.f32.mrf.mxu0
      %v1844 = vadd.f32 0.0, %v1843
      %v1845 = vpop.f32.mrf.mxu0
      %v1846 = vadd.f32 0.0, %v1845
      %1847 = vmatmul.bf16.gmra.mxu0 %v1770
      %v1848 = vpop.f32.mrf.mxu0
      %v1849 = vadd.f32 0.0, %v1848
      %v1850 = vpop.f32.mrf.mxu0
      %v1851 = vadd.f32 0.0, %v1850
      %1852 = vmatmul.bf16.gmra.mxu0 %v1773
      %v1853 = vpop.f32.mrf.mxu0
      %v1854 = vadd.f32 0.0, %v1853
      %v1855 = vpop.f32.mrf.mxu0
      %v1856 = vadd.f32 0.0, %v1855
      %1857 = vmatmul.bf16.gmra.mxu0 %v1776
      %v1858 = vpop.f32.mrf.mxu0
      %v1859 = vadd.f32 0.0, %v1858
      %v1860 = vpop.f32.mrf.mxu0
      %v1861 = vadd.f32 0.0, %v1860
      %1862 = vmatmul.bf16.gmra.mxu0 %v1779
      %v1863 = vpop.f32.mrf.mxu0
      %v1864 = vadd.f32 0.0, %v1863
      %v1865 = vpop.f32.mrf.mxu0
      %v1866 = vadd.f32 0.0, %v1865
      %1867 = vmatmul.bf16.gmra.mxu0 %v1782
      %v1868 = vpop.f32.mrf.mxu0
      %v1869 = vadd.f32 0.0, %v1868
      %v1870 = vpop.f32.mrf.mxu0
      %v1871 = vadd.f32 0.0, %v1870
      %1872 = vmatmul.bf16.gmra.mxu0 %v1785
      %v1873 = vpop.f32.mrf.mxu0
      %v1874 = vadd.f32 0.0, %v1873
      %v1875 = vpop.f32.mrf.mxu0
      %v1876 = vadd.f32 0.0, %v1875
      %1877 = vmatmul.bf16.gmra.mxu0 %v1788
      %v1878 = vpop.f32.mrf.mxu0
      %v1879 = vadd.f32 0.0, %v1878
      %v1880 = vpop.f32.mrf.mxu0
      %v1881 = vadd.f32 0.0, %v1880
      %1882 = vdwg.mxu0
      %v1883 = vld [vmem:[%s5] sm:$0x1]
      %v1885 = vperm.slane %v1883, 0
      %v1887 = vmul.f32 %v1804, %v1885
      %v1888 = vmul.f32 %v1806, %v1885
      %v1889 = vmul.f32 %v1809, %v1885
      %v1890 = vmul.f32 %v1811, %v1885
      %v1891 = vmul.f32 %v1814, %v1885
      %v1892 = vmul.f32 %v1816, %v1885
      %v1893 = vmul.f32 %v1819, %v1885
      %v1894 = vmul.f32 %v1821, %v1885
      %v1895 = vmul.f32 %v1824, %v1885
      %v1896 = vmul.f32 %v1826, %v1885
      %v1897 = vmul.f32 %v1829, %v1885
      %v1898 = vmul.f32 %v1831, %v1885
      %v1899 = vmul.f32 %v1834, %v1885
      %v1900 = vmul.f32 %v1836, %v1885
      %v1901 = vmul.f32 %v1839, %v1885
      %v1902 = vmul.f32 %v1841, %v1885
      %v1903 = vmul.f32 %v1844, %v1885
      %v1904 = vmul.f32 %v1846, %v1885
      %v1905 = vmul.f32 %v1849, %v1885
      %v1906 = vmul.f32 %v1851, %v1885
      %v1907 = vmul.f32 %v1854, %v1885
      %v1908 = vmul.f32 %v1856, %v1885
      %v1909 = vmul.f32 %v1859, %v1885
      %v1910 = vmul.f32 %v1861, %v1885
      %v1911 = vmul.f32 %v1864, %v1885
      %v1912 = vmul.f32 %v1866, %v1885
      %v1913 = vmul.f32 %v1869, %v1885
      %v1914 = vmul.f32 %v1871, %v1885
      %v1915 = vmul.f32 %v1874, %v1885
      %v1916 = vmul.f32 %v1876, %v1885
      %v1917 = vmul.f32 %v1879, %v1885
      %v1918 = vmul.f32 %v1881, %v1885
      %v1919 = vld [vmem:[%s6] sm:$0x1]
      %v1921 = vperm.slane %v1919, 0
      %v1923 = vadd.f32 %v1887, %v1921
      %v1924 = vadd.f32 %v1888, %v1921
      %v1925 = vadd.f32 %v1889, %v1921
      %v1926 = vadd.f32 %v1890, %v1921
      %v1927 = vadd.f32 %v1891, %v1921
      %v1928 = vadd.f32 %v1892, %v1921
      %v1929 = vadd.f32 %v1893, %v1921
      %v1930 = vadd.f32 %v1894, %v1921
      %v1931 = vadd.f32 %v1895, %v1921
      %v1932 = vadd.f32 %v1896, %v1921
      %v1933 = vadd.f32 %v1897, %v1921
      %v1934 = vadd.f32 %v1898, %v1921
      %v1935 = vadd.f32 %v1899, %v1921
      %v1936 = vadd.f32 %v1900, %v1921
      %v1937 = vadd.f32 %v1901, %v1921
      %v1938 = vadd.f32 %v1902, %v1921
      %v1939 = vadd.f32 %v1903, %v1921
      %v1940 = vadd.f32 %v1904, %v1921
      %v1941 = vadd.f32 %v1905, %v1921
      %v1942 = vadd.f32 %v1906, %v1921
      %v1943 = vadd.f32 %v1907, %v1921
      %v1944 = vadd.f32 %v1908, %v1921
      %v1945 = vadd.f32 %v1909, %v1921
      %v1946 = vadd.f32 %v1910, %v1921
      %v1947 = vadd.f32 %v1911, %v1921
      %v1948 = vadd.f32 %v1912, %v1921
      %v1949 = vadd.f32 %v1913, %v1921
      %v1950 = vadd.f32 %v1914, %v1921
      %v1951 = vadd.f32 %v1915, %v1921
      %v1952 = vadd.f32 %v1916, %v1921
      %v1953 = vadd.f32 %v1917, %v1921
      %v1954 = vadd.f32 %v1918, %v1921
      %vm1955 = vcmp.ge.f32.partialorder %v1923, 0.0
      %vm1956 = vcmp.ge.f32.partialorder %v1924, 0.0
      %vm1957 = vcmp.ge.f32.partialorder %v1925, 0.0
      %vm1958 = vcmp.ge.f32.partialorder %v1926, 0.0
      %vm1959 = vcmp.ge.f32.partialorder %v1927, 0.0
      %vm1960 = vcmp.ge.f32.partialorder %v1928, 0.0
      %vm1961 = vcmp.ge.f32.partialorder %v1929, 0.0
      %vm1962 = vcmp.ge.f32.partialorder %v1930, 0.0
      %vm1963 = vcmp.ge.f32.partialorder %v1931, 0.0
      %vm1964 = vcmp.ge.f32.partialorder %v1932, 0.0
      %vm1965 = vcmp.ge.f32.partialorder %v1933, 0.0
      %vm1966 = vcmp.ge.f32.partialorder %v1934, 0.0
      %vm1967 = vcmp.ge.f32.partialorder %v1935, 0.0
      %vm1968 = vcmp.ge.f32.partialorder %v1936, 0.0
      %vm1969 = vcmp.ge.f32.partialorder %v1937, 0.0
      %vm1970 = vcmp.ge.f32.partialorder %v1938, 0.0
      %vm1971 = vcmp.ge.f32.partialorder %v1939, 0.0
      %vm1972 = vcmp.ge.f32.partialorder %v1940, 0.0
      %vm1973 = vcmp.ge.f32.partialorder %v1941, 0.0
      %vm1974 = vcmp.ge.f32.partialorder %v1942, 0.0
      %vm1975 = vcmp.ge.f32.partialorder %v1943, 0.0
      %vm1976 = vcmp.ge.f32.partialorder %v1944, 0.0
      %vm1977 = vcmp.ge.f32.partialorder %v1945, 0.0
      %vm1978 = vcmp.ge.f32.partialorder %v1946, 0.0
      %vm1979 = vcmp.ge.f32.partialorder %v1947, 0.0
      %vm1980 = vcmp.ge.f32.partialorder %v1948, 0.0
      %vm1981 = vcmp.ge.f32.partialorder %v1949, 0.0
      %vm1982 = vcmp.ge.f32.partialorder %v1950, 0.0
      %vm1983 = vcmp.ge.f32.partialorder %v1951, 0.0
      %vm1984 = vcmp.ge.f32.partialorder %v1952, 0.0
      %vm1985 = vcmp.ge.f32.partialorder %v1953, 0.0
      %vm1986 = vcmp.ge.f32.partialorder %v1954, 0.0
      %v1987 = vmul.f32 %v1923, 0.1
      %v1988 = vmul.f32 %v1924, 0.1
      %v1989 = vmul.f32 %v1925, 0.1
      %v1990 = vmul.f32 %v1926, 0.1
      %v1991 = vmul.f32 %v1927, 0.1
      %v1992 = vmul.f32 %v1928, 0.1
      %v1993 = vmul.f32 %v1929, 0.1
      %v1994 = vmul.f32 %v1930, 0.1
      %v1995 = vmul.f32 %v1931, 0.1
      %v1996 = vmul.f32 %v1932, 0.1
      %v1997 = vmul.f32 %v1933, 0.1
      %v1998 = vmul.f32 %v1934, 0.1
      %v1999 = vmul.f32 %v1935, 0.1
      %v2000 = vmul.f32 %v1936, 0.1
      %v2001 = vmul.f32 %v1937, 0.1
      %v2002 = vmul.f32 %v1938, 0.1
      %v2003 = vmul.f32 %v1939, 0.1
      %v2004 = vmul.f32 %v1940, 0.1
      %v2005 = vmul.f32 %v1941, 0.1
      %v2006 = vmul.f32 %v1942, 0.1
      %v2007 = vmul.f32 %v1943, 0.1
      %v2008 = vmul.f32 %v1944, 0.1
      %v2009 = vmul.f32 %v1945, 0.1
      %v2010 = vmul.f32 %v1946, 0.1
      %v2011 = vmul.f32 %v1947, 0.1
      %v2012 = vmul.f32 %v1948, 0.1
      %v2013 = vmul.f32 %v1949, 0.1
      %v2014 = vmul.f32 %v1950, 0.1
      %v2015 = vmul.f32 %v1951, 0.1
      %v2016 = vmul.f32 %v1952, 0.1
      %v2017 = vmul.f32 %v1953, 0.1
      %v2018 = vmul.f32 %v1954, 0.1
      %v2019 = vsel %vm1955, %v1923, %v1987
      %v2020 = vsel %vm1956, %v1924, %v1988
      %v2021 = vsel %vm1957, %v1925, %v1989
      %v2022 = vsel %vm1958, %v1926, %v1990
      %v2023 = vsel %vm1959, %v1927, %v1991
      %v2024 = vsel %vm1960, %v1928, %v1992
      %v2025 = vsel %vm1961, %v1929, %v1993
      %v2026 = vsel %vm1962, %v1930, %v1994
      %v2027 = vsel %vm1963, %v1931, %v1995
      %v2028 = vsel %vm1964, %v1932, %v1996
      %v2029 = vsel %vm1965, %v1933, %v1997
      %v2030 = vsel %vm1966, %v1934, %v1998
      %v2031 = vsel %vm1967, %v1935, %v1999
      %v2032 = vsel %vm1968, %v1936, %v2000
      %v2033 = vsel %vm1969, %v1937, %v2001
      %v2034 = vsel %vm1970, %v1938, %v2002
      %v2035 = vsel %vm1971, %v1939, %v2003
      %v2036 = vsel %vm1972, %v1940, %v2004
      %v2037 = vsel %vm1973, %v1941, %v2005
      %v2038 = vsel %vm1974, %v1942, %v2006
      %v2039 = vsel %vm1975, %v1943, %v2007
      %v2040 = vsel %vm1976, %v1944, %v2008
      %v2041 = vsel %vm1977, %v1945, %v2009
      %v2042 = vsel %vm1978, %v1946, %v2010
      %v2043 = vsel %vm1979, %v1947, %v2011
      %v2044 = vsel %vm1980, %v1948, %v2012
      %v2045 = vsel %vm1981, %v1949, %v2013
      %v2046 = vsel %vm1982, %v1950, %v2014
      %v2047 = vsel %vm1983, %v1951, %v2015
      %v2048 = vsel %vm1984, %v1952, %v2016
      %v2049 = vsel %vm1985, %v1953, %v2017
      %v2050 = vsel %vm1986, %v1954, %v2018
      %v2051 = vunpack.c.l.bf16 %v280
      %v2052 = vunpack.c.l.bf16 %v281
      %v2053 = vunpack.c.l.bf16 %v282
      %v2054 = vunpack.c.l.bf16 %v283
      %v2055 = vunpack.c.l.bf16 %v284
      %v2056 = vunpack.c.l.bf16 %v285
      %v2057 = vunpack.c.l.bf16 %v286
      %v2058 = vunpack.c.l.bf16 %v287
      %v2059 = vunpack.c.l.bf16 %v288
      %v2060 = vunpack.c.l.bf16 %v289
      %v2061 = vunpack.c.l.bf16 %v290
      %v2062 = vunpack.c.l.bf16 %v291
      %v2063 = vunpack.c.l.bf16 %v292
      %v2064 = vunpack.c.l.bf16 %v293
      %v2065 = vunpack.c.l.bf16 %v294
      %v2066 = vunpack.c.l.bf16 %v295
      %v2067 = vunpack.c.l.bf16 %v296
      %v2068 = vunpack.c.l.bf16 %v297
      %v2069 = vunpack.c.l.bf16 %v298
      %v2070 = vunpack.c.l.bf16 %v299
      %v2071 = vunpack.c.l.bf16 %v300
      %v2072 = vunpack.c.l.bf16 %v301
      %v2073 = vunpack.c.l.bf16 %v302
      %v2074 = vunpack.c.l.bf16 %v303
      %v2075 = vunpack.c.l.bf16 %v304
      %v2076 = vunpack.c.l.bf16 %v305
      %v2077 = vunpack.c.l.bf16 %v306
      %v2078 = vunpack.c.l.bf16 %v307
      %v2079 = vunpack.c.l.bf16 %v308
      %v2080 = vunpack.c.l.bf16 %v309
      %v2081 = vunpack.c.l.bf16 %v310
      %v2082 = vunpack.c.l.bf16 %v311
      %v2083 = vadd.f32 %v2019, %v2051
      %v2084 = vadd.f32 %v2020, %v2052
      %v2085 = vadd.f32 %v2021, %v2053
      %v2086 = vadd.f32 %v2022, %v2054
      %v2087 = vadd.f32 %v2023, %v2055
      %v2088 = vadd.f32 %v2024, %v2056
      %v2089 = vadd.f32 %v2025, %v2057
      %v2090 = vadd.f32 %v2026, %v2058
      %v2091 = vadd.f32 %v2027, %v2059
      %v2092 = vadd.f32 %v2028, %v2060
      %v2093 = vadd.f32 %v2029, %v2061
      %v2094 = vadd.f32 %v2030, %v2062
      %v2095 = vadd.f32 %v2031, %v2063
      %v2096 = vadd.f32 %v2032, %v2064
      %v2097 = vadd.f32 %v2033, %v2065
      %v2098 = vadd.f32 %v2034, %v2066
      %v2099 = vadd.f32 %v2035, %v2067
      %v2100 = vadd.f32 %v2036, %v2068
      %v2101 = vadd.f32 %v2037, %v2069
      %v2102 = vadd.f32 %v2038, %v2070
      %v2103 = vadd.f32 %v2039, %v2071
      %v2104 = vadd.f32 %v2040, %v2072
      %v2105 = vadd.f32 %v2041, %v2073
      %v2106 = vadd.f32 %v2042, %v2074
      %v2107 = vadd.f32 %v2043, %v2075
      %v2108 = vadd.f32 %v2044, %v2076
      %v2109 = vadd.f32 %v2045, %v2077
      %v2110 = vadd.f32 %v2046, %v2078
      %v2111 = vadd.f32 %v2047, %v2079
      %v2112 = vadd.f32 %v2048, %v2080
      %v2113 = vadd.f32 %v2049, %v2081
      %v2114 = vadd.f32 %v2050, %v2082
      %2115 = vst.msk [vmem:[%s278] sm:$0xff] %vm393, %v2083
      %2116 = vst.msk [vmem:[%s278 + $0x8] sm:$0xff] %vm393, %v2084
      %2117 = vst.msk [vmem:[%s278 + $0x10] sm:$0xff] %vm393, %v2085
      %2118 = vst.msk [vmem:[%s278 + $0x18] sm:$0xff] %vm393, %v2086
      %2119 = vst.msk [vmem:[%s278 + $0x20] sm:$0xff] %vm393, %v2087
      %2120 = vst.msk [vmem:[%s278 + $0x28] sm:$0xff] %vm393, %v2088
      %2121 = vst.msk [vmem:[%s278 + $0x30] sm:$0xff] %vm393, %v2089
      %2122 = vst.msk [vmem:[%s278 + $0x38] sm:$0xff] %vm393, %v2090
      %2123 = vst.msk [vmem:[%s278 + $0x40] sm:$0xff] %vm393, %v2091
      %2124 = vst.msk [vmem:[%s278 + $0x48] sm:$0xff] %vm393, %v2092
      %2125 = vst.msk [vmem:[%s278 + $0x50] sm:$0xff] %vm393, %v2093
      %2126 = vst.msk [vmem:[%s278 + $0x58] sm:$0xff] %vm393, %v2094
      %2127 = vst.msk [vmem:[%s278 + $0x60] sm:$0xff] %vm393, %v2095
      %2128 = vst.msk [vmem:[%s278 + $0x68] sm:$0xff] %vm393, %v2096
      %2129 = vst.msk [vmem:[%s278 + $0x70] sm:$0xff] %vm393, %v2097
      %2130 = vst.msk [vmem:[%s278 + $0x78] sm:$0xff] %vm393, %v2098
      %2131 = vst.msk [vmem:[%s278 + $0x80] sm:$0xff] %vm393, %v2099
      %2132 = vst.msk [vmem:[%s278 + $0x88] sm:$0xff] %vm393, %v2100
      %2133 = vst.msk [vmem:[%s278 + $0x90] sm:$0xff] %vm393, %v2101
      %2134 = vst.msk [vmem:[%s278 + $0x98] sm:$0xff] %vm393, %v2102
      %2135 = vst.msk [vmem:[%s278 + $0xa0] sm:$0xff] %vm393, %v2103
      %2136 = vst.msk [vmem:[%s278 + $0xa8] sm:$0xff] %vm393, %v2104
      %2137 = vst.msk [vmem:[%s278 + $0xb0] sm:$0xff] %vm393, %v2105
      %2138 = vst.msk [vmem:[%s278 + $0xb8] sm:$0xff] %vm393, %v2106
      %2139 = vst.msk [vmem:[%s278 + $0xc0] sm:$0xff] %vm393, %v2107
      %2140 = vst.msk [vmem:[%s278 + $0xc8] sm:$0xff] %vm393, %v2108
      %2141 = vst.msk [vmem:[%s278 + $0xd0] sm:$0xff] %vm393, %v2109
      %2142 = vst.msk [vmem:[%s278 + $0xd8] sm:$0xff] %vm393, %v2110
      %2143 = vst.msk [vmem:[%s278 + $0xe0] sm:$0xff] %vm393, %v2111
      %2144 = vst.msk [vmem:[%s278 + $0xe8] sm:$0xff] %vm393, %v2112
      %2145 = vst.msk [vmem:[%s278 + $0xf0] sm:$0xff] %vm393, %v2113
      %2146 = vst.msk [vmem:[%s278 + $0xf8] sm:$0xff] %vm393, %v2114
      %p2147 = scmp.lt.s32.totalorder %s18, 1
      %s2148 = scalar_select %p2147, %s18, 1
      %s2149 = smul.addr %s2148, 32
      %s2150 = smul.addr %s2149, 8
      %s2151 = scalar_lea.vmem %s7, %s2150
      // Predicated region
      $region49: #{resblock_forward.1} parent=47 // pred_check
        %p2152 = pneg %p188
      $region50: #{resblock_forward.1} parent=47 // pred_check_branch
        %2154 = sbr.rel (%p2152) target = $region52
      $region51: #{resblock_forward.1} parent=47 // pred_region
        _
      $region52: #{resblock_forward.1} parent=47 // pred_fallthru
        _
    $region48: #{resblock_forward.1} parent=5 // pred_fallthru
      _
    %p2155 = scmp.le.s32.totalorder 2, %s13
    // Predicated region
    $region53: #{resblock_forward.1} parent=5 // pred_check
      %p2156 = pneg %p2155
    $region54: #{resblock_forward.1} parent=5 // pred_check_branch
      %2158 = sbr.rel (%p2156) target = $region56
    $region55: #{resblock_forward.1} parent=5 // pred_region
      %s2159 = ssub.s32 %s13, 2
      // Predicated region
      $region57: #{resblock_forward.1} parent=55 // pred_check
        %p2160 = pneg %p194
      $region58: #{resblock_forward.1} parent=55 // pred_check_branch
        %2162 = sbr.rel (%p2160) target = $region60
      $region59: #{resblock_forward.1} parent=55 // pred_region
        %p2163 = scmp.lt.s32.totalorder %s19, 1
        %s2164 = scalar_select %p2163, %s19, 1
        %s2165 = smul.addr %s2164, 32
        %s2166 = smul.addr %s2165, 8
        %s2167 = scalar_lea.vmem %s7, %s2166
      $region60: #{resblock_forward.1} parent=55 // pred_fallthru
        _
    $region56: #{resblock_forward.1} parent=5 // pred_fallthru
      _
  $region6: #{resblock_forward.1} parent=0 // loop_footer
    %s17 = sadd.s32 1, %s13
  $region7: #{resblock_forward.1} parent=0 // loop_footer_branch
    %12 = sbr.rel target = $region3
  $region8: #{resblock_forward.1} parent=0 // loop_exit
    _

</llo_original>
